<compile_context>
chip_gen: v7x
topology: tpu7x:2x2x1
jax: 0.10.0
libtpu: 0.0.40
codegen_flags: <defaults>
</compile_context>

<pallas_src>
import numpy as np
import jax
import jax.numpy as jnp
from jax import lax
from jax.experimental import pallas as pl
from jax.experimental.pallas import tpu as pltpu


def _custom_loss_kernel(labels_ref, preds_ref, out_ref):
    labels = labels_ref[0]            # [N, 4]  box_a (f32)
    preds = preds_ref[0]              # [N, 4]  box_b (f32)
    N = labels.shape[0]

    # Fused lane layout: lanes [0, N) = JM, lanes [N, N+4) = labels, rest pad.
    W = 1
    while W < N + 4:
        W *= 2
    # single-vreg lane packing + bitwise column decode need these (review #7)
    assert W <= 64 and (W & (W - 1)) == 0      # 2*W <= 128 for the fused reduce

    row_i = lax.broadcasted_iota(jnp.int32, (N, W), 0)   # [N, W]
    col_i = lax.broadcasted_iota(jnp.int32, (N, W), 1)   # [N, W]
    flat_i = row_i * W + col_i                           # row-major tie-break key
    eye = row_i == col_i                                 # diagonal (only j < N hits)
    riota = lax.broadcasted_iota(jnp.int32, (N, 1), 0)   # [N, 1]
    ciota = lax.broadcasted_iota(jnp.int32, (1, W), 1)   # [1, W]

    # ---- move prediction coords onto the lane axis (in-kernel "transpose") ----
    def col_to_lane_row(col):         # [N, 1] -> [1, W]  (exact one-hot pick)
        return jnp.sum(jnp.where(eye, col, 0.0), axis=0, keepdims=True)

    ax1 = labels[:, 0:1]; ay1 = labels[:, 1:2]
    ax2 = labels[:, 2:3]; ay2 = labels[:, 3:4]            # [N, 1]
    bx1 = col_to_lane_row(preds[:, 0:1]); by1 = col_to_lane_row(preds[:, 1:2])
    bx2 = col_to_lane_row(preds[:, 2:3]); by2 = col_to_lane_row(preds[:, 3:4])

    # ---- jaccard(labels, predictions) computed at lane width W ----
    iw = jnp.maximum(jnp.minimum(ax2, bx2) - jnp.maximum(ax1, bx1), 0.0)
    ih = jnp.maximum(jnp.minimum(ay2, by2) - jnp.maximum(ay1, by1), 0.0)
    inter = iw * ih                                       # [N, W]
    area_a = (ax2 - ax1) * (ay2 - ay1)                    # [N, 1]
    area_b = (bx2 - bx1) * (by2 - by1)                    # [1, W]
    union = area_a + area_b - inter
    # EXACT divide (greedy '>=' tie-break must not move); degenerate union -> -1
    # sentinel so it is never selected (torch's NaN entries are skipped by '>=').
    jm_wide = jnp.where(union > 0.0, inter / union, -1.0)

    # ---- fused state buffer: [ JM | labels | pad ] ----
    state = jm_wide
    for k in range(4):
        state = jnp.where(col_i == N + k, labels[:, k:k + 1], state)

    # ---- greedy matching loop (same semantics as the torch python loop) ----
    seen_r = jnp.zeros((N, 1), dtype=jnp.bool_)
    seen_c = ciota >= N               # lanes >= N are never candidates

    # N is static and small -> unroll the matching loop.
    for _ in range(N):
        valid = jnp.logical_and(jnp.logical_not(seen_r), jnp.logical_not(seen_c))
        masked = jnp.where(valid, state, -1.0)
        m = jnp.max(masked)
        # torch scan uses `>=` in row-major order => last entry reaching max wins
        cand = jnp.where(jnp.logical_and(valid, masked >= m), flat_i, -1)
        sel = jnp.max(cand)

        # One broadcast of sel; `hit` has exactly one True (flat_i unique, >= 0),
        # so no extra `& valid` is needed.
        hit = flat_i == sel                               # [N, W]
        is_r = jnp.any(hit, axis=1, keepdims=True)        # [N, 1] row r one-hot
        hit_col = jnp.any(hit, axis=0, keepdims=True)     # [1, W] col c one-hot
        c = jnp.bitwise_and(sel, W - 1)                   # mIndex[1]
        is_c = riota == c                                 # [N, 1] row c one-hot

        # Fused double-width extraction: ONE sublane reduce for both swap rows.
        both = jnp.concatenate(
            [jnp.where(is_r, state, 0.0), jnp.where(is_c, state, 0.0)], axis=1)
        rows = jnp.sum(both, axis=0, keepdims=True)       # [1, 2W] = [row_r|row_c]
        row_r = rows[:, :W]
        row_c = rows[:, W:]

        # single fused row swap of [ JM | labels ]
        state = jnp.where(is_r, row_c, jnp.where(is_c, row_r, state))
        seen_r = jnp.logical_or(seen_r, is_c)             # seen.add(mIndex[1]) rows
        seen_c = jnp.logical_or(seen_c, hit_col)          # seen.add(mIndex[1]) cols

    # ---- F.l1_loss(permuted_labels, predictions)  (mean reduction) ----
    perm_labels = state[:, N:N + 4]                       # [N, 4]
    loss = jnp.sum(jnp.abs(perm_labels - preds)) * (1.0 / (N * 4.0))
    out_ref[...] = jnp.broadcast_to(loss, out_ref.shape)  # lane-dense store


def _batched_loss(labels_b, preds_b):
    """One pallas_call over B independent (labels, predictions) pairs."""
    B, N, C = labels_b.shape
    assert C == 4 and preds_b.shape == (B, N, 4)
    assert N + 4 <= 64, "single-vreg lane packing requires 2*W <= 128"

    labels_b = labels_b.astype(jnp.float32)
    preds_b = preds_b.astype(jnp.float32)

    out = pl.pallas_call(
        _custom_loss_kernel,
        out_shape=jax.ShapeDtypeStruct((B, 1, 128), jnp.float32),
        grid=(B,),
        in_specs=[
            pl.BlockSpec((1, N, 4), lambda b: (b, 0, 0)),
            pl.BlockSpec((1, N, 4), lambda b: (b, 0, 0)),
        ],
        out_specs=pl.BlockSpec((1, 1, 128), lambda b: (b, 0, 0)),
        compiler_params=pltpu.CompilerParams(
            dimension_semantics=("parallel",)),   # shards batch across TCs (v7x)
    )(labels_b, preds_b)
    return out[:, 0, 0]                                    # [B]


def custom_loss_batched(predictions, labels):
    """Batched perf entry point: predictions/labels are [B, N, 4] with equal N."""
    return _batched_loss(labels, predictions)


def custom_loss(predictions, labels, scores):
    """JAX/Pallas port of CustomLoss.forward (shapes are static -> python ifs)."""
    P = predictions.shape[0]
    L = labels.shape[0]
    if L > P:
        labels = labels[:P]
        diff = L - P
    elif L < P:
        # torch code zeroes trailing `scores` entries, but those only feed the
        # discarded cross-entropy term -> no effect on the returned loss.
        predictions = predictions[:L]
        diff = L - P                  # negative, matching torch's `diff * 4` add
    else:
        diff = 0
    del scores  # TODO(synk): `loss.add(F.cross_entropy(...))` result is discarded

    loss = _batched_loss(labels[None], predictions[None])[0]
    if diff != 0:
        loss = loss + diff * 4.0
    return loss


def _reference_loss(predictions, labels):
    """NumPy transliteration of the torch forward (equal-size path) for checking."""
    preds = np.asarray(predictions, dtype=np.float32)
    labs = np.asarray(labels, dtype=np.float32)
    max_xy = np.minimum(labs[:, None, 2:], preds[None, :, 2:])
    min_xy = np.maximum(labs[:, None, :2], preds[None, :, :2])
    wh = np.clip(max_xy - min_xy, 0, None)
    inter = wh[:, :, 0] * wh[:, :, 1]
    area_a = ((labs[:, 2] - labs[:, 0]) * (labs[:, 3] - labs[:, 1]))[:, None]
    area_b = ((preds[:, 2] - preds[:, 0]) * (preds[:, 3] - preds[:, 1]))[None, :]
    jm = inter / (area_a + area_b - inter)
    seen = set()
    for _ in range(len(jm)):
        indices = list(range(labs.shape[0]))
        m = 0.0
        mIndex = ()
        for idx1 in range(jm.shape[0]):
            if idx1 in seen:
                continue
            for idx2 in range(jm.shape[1]):
                if idx2 in seen:
                    continue
                if jm[idx1, idx2] >= m:
                    m = jm[idx1, idx2]
                    mIndex = (idx1, idx2)
        seen.add(mIndex[1])
        indices[mIndex[0]], indices[mIndex[1]] = indices[mIndex[1]], indices[mIndex[0]]
        labs = labs[indices]
        jm = jm[indices]
    return float(np.mean(np.abs(labs - preds)))


if __name__ == "__main__":
    # CustomLoss has no learnable parameters (__init__ is empty).
    key = jax.random.PRNGKey(0)
    kl1, kl2, kp1, kp2, ks = jax.random.split(key, 5)
    B, N = 4, 8  # batch of independent box sets, 8 boxes each (seq=8)

    lab_xy = jax.random.uniform(kl1, (B, N, 2), minval=0.0, maxval=0.6)
    lab_wh = jax.random.uniform(kl2, (B, N, 2), minval=0.1, maxval=0.4)
    labels_b = jnp.concatenate([lab_xy, lab_xy + lab_wh], axis=-1).astype(jnp.float32)

    pred_xy = jax.random.uniform(kp1, (B, N, 2), minval=0.0, maxval=0.6)
    pred_wh = jax.random.uniform(kp2, (B, N, 2), minval=0.1, maxval=0.4)
    preds_b = jnp.concatenate([pred_xy, pred_xy + pred_wh], axis=-1).astype(jnp.float32)

    scores = jax.random.uniform(ks, (N,), dtype=jnp.float32)

    # Batched call: one pallas_call, parallel grid over B.
    losses = jax.block_until_ready(custom_loss_batched(preds_b, labels_b))

    # Single-sample API matching the torch module signature.
    loss0 = jax.block_until_ready(custom_loss(preds_b[0], labels_b[0], scores))

    for b in range(B):
        ref = _reference_loss(np.array(preds_b[b]), np.array(labels_b[b]))
        assert np.allclose(float(losses[b]), ref, rtol=1e-4, atol=1e-5), (
            b, float(losses[b]), ref)
    assert np.allclose(float(loss0), float(losses[0]), rtol=1e-5, atol=1e-6), (
        float(loss0), float(losses[0]))
    print("KERNEL_OK")
</pallas_src>

<mosaic_0001>
module attributes {stable_mosaic.version = 11 : i64} {
  func.func @_custom_loss_kernel(%arg0: i32, %arg1: memref<1x8x4xf32, #tpu.memory_space<vmem>>, %arg2: memref<1x8x4xf32, #tpu.memory_space<vmem>>, %arg3: memref<1x1x128xf32, #tpu.memory_space<vmem>>) attributes {dimension_semantics = [#tpu.dimension_semantics<parallel>], iteration_bounds = array<i64: 4>, scalar_prefetch = 0 : i64, scratch_operands = 0 : i64, tpu.core_type = #tpu.core_type<tc>, window_params = [{transform_indices = @transform_0, window_bounds = array<i64: 1, 8, 4>}, {transform_indices = @transform_1, window_bounds = array<i64: 1, 8, 4>}, {transform_indices = @transform_2, window_bounds = array<i64: 1, 1, 128>}]} {
    %c0 = arith.constant 0 : index
    %c0_0 = arith.constant 0 : index
    %c0_1 = arith.constant 0 : index
    %0 = vector.load %arg1[%c0, %c0_0, %c0_1] : memref<1x8x4xf32, #tpu.memory_space<vmem>>, vector<1x8x4xf32>
    %1 = vector.shape_cast %0 : vector<1x8x4xf32> to vector<8x4xf32>
    %c0_2 = arith.constant 0 : index
    %c0_3 = arith.constant 0 : index
    %c0_4 = arith.constant 0 : index
    %2 = vector.load %arg2[%c0_2, %c0_3, %c0_4] : memref<1x8x4xf32, #tpu.memory_space<vmem>>, vector<1x8x4xf32>
    %3 = vector.shape_cast %2 : vector<1x8x4xf32> to vector<8x4xf32>
    %4 = tpu.iota {dimensions = array<i32: 0>} : vector<8x16xi32>
    %5 = tpu.iota {dimensions = array<i32: 1>} : vector<8x16xi32>
    %c16_i32 = arith.constant 16 : i32
    %6 = vector.broadcast %c16_i32 : i32 to vector<8x16xi32>
    %7 = arith.muli %4, %6 : vector<8x16xi32>
    %8 = arith.addi %7, %5 : vector<8x16xi32>
    %9 = arith.cmpi eq, %4, %5 : vector<8x16xi32>
    %10 = tpu.iota {dimensions = array<i32: 0>} : vector<8x1xi32>
    %11 = tpu.iota {dimensions = array<i32: 1>} : vector<1x16xi32>
    %12 = vector.extract_strided_slice %1 {offsets = [0, 0], sizes = [8, 1], strides = [1, 1]} : vector<8x4xf32> to vector<8x1xf32>
    %13 = vector.extract_strided_slice %1 {offsets = [0, 1], sizes = [8, 1], strides = [1, 1]} : vector<8x4xf32> to vector<8x1xf32>
    %14 = vector.extract_strided_slice %1 {offsets = [0, 2], sizes = [8, 1], strides = [1, 1]} : vector<8x4xf32> to vector<8x1xf32>
    %15 = vector.extract_strided_slice %1 {offsets = [0, 3], sizes = [8, 1], strides = [1, 1]} : vector<8x4xf32> to vector<8x1xf32>
    %16 = vector.extract_strided_slice %3 {offsets = [0, 0], sizes = [8, 1], strides = [1, 1]} : vector<8x4xf32> to vector<8x1xf32>
    %cst = arith.constant 0.000000e+00 : f32
    %17 = vector.shape_cast %16 : vector<8x1xf32> to vector<8x1xf32>
    %18 = vector.broadcast %17 : vector<8x1xf32> to vector<8x16xf32>
    %19 = vector.broadcast %cst : f32 to vector<8x16xf32>
    %20 = arith.select %9, %18, %19 : vector<8x16xi1>, vector<8x16xf32>
    %cst_5 = arith.constant dense<0.000000e+00> : vector<16xf32>
    %21 = vector.multi_reduction <add>, %20, %cst_5 [0] : vector<8x16xf32> to vector<16xf32>
    %22 = vector.shape_cast %21 : vector<16xf32> to vector<1x16xf32>
    %23 = vector.extract_strided_slice %3 {offsets = [0, 1], sizes = [8, 1], strides = [1, 1]} : vector<8x4xf32> to vector<8x1xf32>
    %cst_6 = arith.constant 0.000000e+00 : f32
    %24 = vector.shape_cast %23 : vector<8x1xf32> to vector<8x1xf32>
    %25 = vector.broadcast %24 : vector<8x1xf32> to vector<8x16xf32>
    %26 = vector.broadcast %cst_6 : f32 to vector<8x16xf32>
    %27 = arith.select %9, %25, %26 : vector<8x16xi1>, vector<8x16xf32>
    %cst_7 = arith.constant dense<0.000000e+00> : vector<16xf32>
    %28 = vector.multi_reduction <add>, %27, %cst_7 [0] : vector<8x16xf32> to vector<16xf32>
    %29 = vector.shape_cast %28 : vector<16xf32> to vector<1x16xf32>
    %30 = vector.extract_strided_slice %3 {offsets = [0, 2], sizes = [8, 1], strides = [1, 1]} : vector<8x4xf32> to vector<8x1xf32>
    %cst_8 = arith.constant 0.000000e+00 : f32
    %31 = vector.shape_cast %30 : vector<8x1xf32> to vector<8x1xf32>
    %32 = vector.broadcast %31 : vector<8x1xf32> to vector<8x16xf32>
    %33 = vector.broadcast %cst_8 : f32 to vector<8x16xf32>
    %34 = arith.select %9, %32, %33 : vector<8x16xi1>, vector<8x16xf32>
    %cst_9 = arith.constant dense<0.000000e+00> : vector<16xf32>
    %35 = vector.multi_reduction <add>, %34, %cst_9 [0] : vector<8x16xf32> to vector<16xf32>
    %36 = vector.shape_cast %35 : vector<16xf32> to vector<1x16xf32>
    %37 = vector.extract_strided_slice %3 {offsets = [0, 3], sizes = [8, 1], strides = [1, 1]} : vector<8x4xf32> to vector<8x1xf32>
    %cst_10 = arith.constant 0.000000e+00 : f32
    %38 = vector.shape_cast %37 : vector<8x1xf32> to vector<8x1xf32>
    %39 = vector.broadcast %38 : vector<8x1xf32> to vector<8x16xf32>
    %40 = vector.broadcast %cst_10 : f32 to vector<8x16xf32>
    %41 = arith.select %9, %39, %40 : vector<8x16xi1>, vector<8x16xf32>
    %cst_11 = arith.constant dense<0.000000e+00> : vector<16xf32>
    %42 = vector.multi_reduction <add>, %41, %cst_11 [0] : vector<8x16xf32> to vector<16xf32>
    %43 = vector.shape_cast %42 : vector<16xf32> to vector<1x16xf32>
    %44 = vector.broadcast %14 : vector<8x1xf32> to vector<8x16xf32>
    %45 = vector.broadcast %36 : vector<1x16xf32> to vector<8x16xf32>
    %46 = arith.minimumf %44, %45 : vector<8x16xf32>
    %47 = vector.broadcast %12 : vector<8x1xf32> to vector<8x16xf32>
    %48 = vector.broadcast %22 : vector<1x16xf32> to vector<8x16xf32>
    %49 = arith.maximumf %47, %48 : vector<8x16xf32>
    %50 = arith.subf %46, %49 : vector<8x16xf32>
    %cst_12 = arith.constant 0.000000e+00 : f32
    %51 = vector.broadcast %cst_12 : f32 to vector<8x16xf32>
    %52 = arith.maximumf %50, %51 : vector<8x16xf32>
    %53 = vector.broadcast %15 : vector<8x1xf32> to vector<8x16xf32>
    %54 = vector.broadcast %43 : vector<1x16xf32> to vector<8x16xf32>
    %55 = arith.minimumf %53, %54 : vector<8x16xf32>
    %56 = vector.broadcast %13 : vector<8x1xf32> to vector<8x16xf32>
    %57 = vector.broadcast %29 : vector<1x16xf32> to vector<8x16xf32>
    %58 = arith.maximumf %56, %57 : vector<8x16xf32>
    %59 = arith.subf %55, %58 : vector<8x16xf32>
    %cst_13 = arith.constant 0.000000e+00 : f32
    %60 = vector.broadcast %cst_13 : f32 to vector<8x16xf32>
    %61 = arith.maximumf %59, %60 : vector<8x16xf32>
    %62 = arith.mulf %52, %61 : vector<8x16xf32>
    %63 = arith.subf %14, %12 : vector<8x1xf32>
    %64 = arith.subf %15, %13 : vector<8x1xf32>
    %65 = arith.mulf %63, %64 : vector<8x1xf32>
    %66 = arith.subf %36, %22 : vector<1x16xf32>
    %67 = arith.subf %43, %29 : vector<1x16xf32>
    %68 = arith.mulf %66, %67 : vector<1x16xf32>
    %69 = vector.broadcast %65 : vector<8x1xf32> to vector<8x16xf32>
    %70 = vector.broadcast %68 : vector<1x16xf32> to vector<8x16xf32>
    %71 = arith.addf %69, %70 : vector<8x16xf32>
    %72 = arith.subf %71, %62 : vector<8x16xf32>
    %cst_14 = arith.constant 0.000000e+00 : f32
    %73 = vector.broadcast %cst_14 : f32 to vector<8x16xf32>
    %74 = arith.cmpf ogt, %72, %73 : vector<8x16xf32>
    %75 = arith.divf %62, %72 : vector<8x16xf32>
    %cst_15 = arith.constant -1.000000e+00 : f32
    %76 = vector.broadcast %cst_15 : f32 to vector<8x16xf32>
    %77 = arith.select %74, %75, %76 : vector<8x16xi1>, vector<8x16xf32>
    %c8_i32 = arith.constant 8 : i32
    %78 = vector.broadcast %c8_i32 : i32 to vector<8x16xi32>
    %79 = arith.cmpi eq, %5, %78 : vector<8x16xi32>
    %80 = vector.extract_strided_slice %1 {offsets = [0, 0], sizes = [8, 1], strides = [1, 1]} : vector<8x4xf32> to vector<8x1xf32>
    %81 = vector.shape_cast %80 : vector<8x1xf32> to vector<8x1xf32>
    %82 = vector.broadcast %81 : vector<8x1xf32> to vector<8x16xf32>
    %83 = arith.select %79, %82, %77 : vector<8x16xi1>, vector<8x16xf32>
    %c9_i32 = arith.constant 9 : i32
    %84 = vector.broadcast %c9_i32 : i32 to vector<8x16xi32>
    %85 = arith.cmpi eq, %5, %84 : vector<8x16xi32>
    %86 = vector.extract_strided_slice %1 {offsets = [0, 1], sizes = [8, 1], strides = [1, 1]} : vector<8x4xf32> to vector<8x1xf32>
    %87 = vector.shape_cast %86 : vector<8x1xf32> to vector<8x1xf32>
    %88 = vector.broadcast %87 : vector<8x1xf32> to vector<8x16xf32>
    %89 = arith.select %85, %88, %83 : vector<8x16xi1>, vector<8x16xf32>
    %c10_i32 = arith.constant 10 : i32
    %90 = vector.broadcast %c10_i32 : i32 to vector<8x16xi32>
    %91 = arith.cmpi eq, %5, %90 : vector<8x16xi32>
    %92 = vector.extract_strided_slice %1 {offsets = [0, 2], sizes = [8, 1], strides = [1, 1]} : vector<8x4xf32> to vector<8x1xf32>
    %93 = vector.shape_cast %92 : vector<8x1xf32> to vector<8x1xf32>
    %94 = vector.broadcast %93 : vector<8x1xf32> to vector<8x16xf32>
    %95 = arith.select %91, %94, %89 : vector<8x16xi1>, vector<8x16xf32>
    %c11_i32 = arith.constant 11 : i32
    %96 = vector.broadcast %c11_i32 : i32 to vector<8x16xi32>
    %97 = arith.cmpi eq, %5, %96 : vector<8x16xi32>
    %98 = vector.extract_strided_slice %1 {offsets = [0, 3], sizes = [8, 1], strides = [1, 1]} : vector<8x4xf32> to vector<8x1xf32>
    %99 = vector.shape_cast %98 : vector<8x1xf32> to vector<8x1xf32>
    %100 = vector.broadcast %99 : vector<8x1xf32> to vector<8x16xf32>
    %101 = arith.select %97, %100, %95 : vector<8x16xi1>, vector<8x16xf32>
    %false = arith.constant false
    %102 = vector.broadcast %false : i1 to vector<8x1xi1>
    %c8_i32_16 = arith.constant 8 : i32
    %103 = vector.broadcast %c8_i32_16 : i32 to vector<1x16xi32>
    %104 = arith.cmpi sge, %11, %103 : vector<1x16xi32>
    %cst_17 = arith.constant dense<true> : vector<8x1xi1>
    %105 = arith.xori %102, %cst_17 : vector<8x1xi1>
    %cst_18 = arith.constant dense<true> : vector<1x16xi1>
    %106 = arith.xori %104, %cst_18 : vector<1x16xi1>
    %107 = vector.broadcast %105 : vector<8x1xi1> to vector<8x16xi1>
    %108 = vector.broadcast %106 : vector<1x16xi1> to vector<8x16xi1>
    %109 = arith.andi %107, %108 : vector<8x16xi1>
    %cst_19 = arith.constant -1.000000e+00 : f32
    %110 = vector.broadcast %cst_19 : f32 to vector<8x16xf32>
    %111 = arith.select %109, %101, %110 : vector<8x16xi1>, vector<8x16xf32>
    %112 = vector.shape_cast %111 : vector<8x16xf32> to vector<1x8x16xf32>
    %cst_20 = arith.constant dense<0xFF800000> : vector<1xf32>
    %113 = vector.multi_reduction <maximumf>, %112, %cst_20 [1, 2] : vector<1x8x16xf32> to vector<1xf32>
    %114 = vector.shape_cast %113 : vector<1xf32> to vector<1x1x1xf32>
    %115 = vector.extract %114[0, 0, 0] : f32 from vector<1x1x1xf32>
    %116 = vector.broadcast %115 : f32 to vector<8x16xf32>
    %117 = arith.cmpf oge, %111, %116 : vector<8x16xf32>
    %118 = arith.andi %109, %117 : vector<8x16xi1>
    %c-1_i32 = arith.constant -1 : i32
    %119 = vector.broadcast %c-1_i32 : i32 to vector<8x16xi32>
    %120 = arith.select %118, %8, %119 : vector<8x16xi1>, vector<8x16xi32>
    %121 = vector.shape_cast %120 : vector<8x16xi32> to vector<1x8x16xi32>
    %cst_21 = arith.constant dense<-2147483648> : vector<1xi32>
    %122 = vector.multi_reduction <maxsi>, %121, %cst_21 [1, 2] : vector<1x8x16xi32> to vector<1xi32>
    %123 = vector.shape_cast %122 : vector<1xi32> to vector<1x1x1xi32>
    %124 = vector.extract %123[0, 0, 0] : i32 from vector<1x1x1xi32>
    %125 = vector.broadcast %124 : i32 to vector<8x16xi32>
    %126 = arith.cmpi eq, %8, %125 : vector<8x16xi32>
    %cst_22 = arith.constant 1.000000e+00 : f32
    %cst_23 = arith.constant 0.000000e+00 : f32
    %127 = vector.broadcast %cst_22 : f32 to vector<8x16xf32>
    %128 = vector.broadcast %cst_23 : f32 to vector<8x16xf32>
    %129 = arith.select %126, %127, %128 : vector<8x16xi1>, vector<8x16xf32>
    %cst_24 = arith.constant dense<0xFF800000> : vector<8xf32>
    %130 = vector.multi_reduction <maximumf>, %129, %cst_24 [1] : vector<8x16xf32> to vector<8xf32>
    %cst_25 = arith.constant 0.000000e+00 : f32
    %131 = vector.broadcast %cst_25 : f32 to vector<8xf32>
    %132 = arith.cmpf ogt, %130, %131 : vector<8xf32>
    %133 = vector.shape_cast %132 : vector<8xi1> to vector<8x1xi1>
    %cst_26 = arith.constant 1.000000e+00 : f32
    %cst_27 = arith.constant 0.000000e+00 : f32
    %134 = vector.broadcast %cst_26 : f32 to vector<8x16xf32>
    %135 = vector.broadcast %cst_27 : f32 to vector<8x16xf32>
    %136 = arith.select %126, %134, %135 : vector<8x16xi1>, vector<8x16xf32>
    %cst_28 = arith.constant dense<0xFF800000> : vector<16xf32>
    %137 = vector.multi_reduction <maximumf>, %136, %cst_28 [0] : vector<8x16xf32> to vector<16xf32>
    %cst_29 = arith.constant 0.000000e+00 : f32
    %138 = vector.broadcast %cst_29 : f32 to vector<16xf32>
    %139 = arith.cmpf ogt, %137, %138 : vector<16xf32>
    %140 = vector.shape_cast %139 : vector<16xi1> to vector<1x16xi1>
    %c15_i32 = arith.constant 15 : i32
    %141 = arith.andi %124, %c15_i32 : i32
    %142 = vector.broadcast %141 : i32 to vector<8x1xi32>
    %143 = arith.cmpi eq, %10, %142 : vector<8x1xi32>
    %cst_30 = arith.constant 0.000000e+00 : f32
    %144 = vector.shape_cast %133 : vector<8x1xi1> to vector<8x1xi1>
    %145 = vector.broadcast %144 : vector<8x1xi1> to vector<8x16xi1>
    %146 = vector.broadcast %cst_30 : f32 to vector<8x16xf32>
    %147 = arith.select %145, %101, %146 : vector<8x16xi1>, vector<8x16xf32>
    %cst_31 = arith.constant 0.000000e+00 : f32
    %148 = vector.shape_cast %143 : vector<8x1xi1> to vector<8x1xi1>
    %149 = vector.broadcast %148 : vector<8x1xi1> to vector<8x16xi1>
    %150 = vector.broadcast %cst_31 : f32 to vector<8x16xf32>
    %151 = arith.select %149, %101, %150 : vector<8x16xi1>, vector<8x16xf32>
    %152 = tpu.concatenate %147, %151 in 1 : vector<8x16xf32>, vector<8x16xf32> -> vector<8x32xf32>
    %cst_32 = arith.constant dense<0.000000e+00> : vector<32xf32>
    %153 = vector.multi_reduction <add>, %152, %cst_32 [0] : vector<8x32xf32> to vector<32xf32>
    %154 = vector.shape_cast %153 : vector<32xf32> to vector<1x32xf32>
    %155 = vector.extract_strided_slice %154 {offsets = [0, 0], sizes = [1, 16], strides = [1, 1]} : vector<1x32xf32> to vector<1x16xf32>
    %156 = vector.extract_strided_slice %154 {offsets = [0, 16], sizes = [1, 16], strides = [1, 1]} : vector<1x32xf32> to vector<1x16xf32>
    %157 = vector.shape_cast %143 : vector<8x1xi1> to vector<8x1xi1>
    %158 = vector.broadcast %157 : vector<8x1xi1> to vector<8x16xi1>
    %159 = vector.shape_cast %155 : vector<1x16xf32> to vector<1x16xf32>
    %160 = vector.broadcast %159 : vector<1x16xf32> to vector<8x16xf32>
    %161 = arith.select %158, %160, %101 : vector<8x16xi1>, vector<8x16xf32>
    %162 = vector.shape_cast %133 : vector<8x1xi1> to vector<8x1xi1>
    %163 = vector.broadcast %162 : vector<8x1xi1> to vector<8x16xi1>
    %164 = vector.shape_cast %156 : vector<1x16xf32> to vector<1x16xf32>
    %165 = vector.broadcast %164 : vector<1x16xf32> to vector<8x16xf32>
    %166 = arith.select %163, %165, %161 : vector<8x16xi1>, vector<8x16xf32>
    %167 = arith.ori %102, %143 : vector<8x1xi1>
    %168 = arith.ori %104, %140 : vector<1x16xi1>
    %cst_33 = arith.constant dense<true> : vector<8x1xi1>
    %169 = arith.xori %167, %cst_33 : vector<8x1xi1>
    %cst_34 = arith.constant dense<true> : vector<1x16xi1>
    %170 = arith.xori %168, %cst_34 : vector<1x16xi1>
    %171 = vector.broadcast %169 : vector<8x1xi1> to vector<8x16xi1>
    %172 = vector.broadcast %170 : vector<1x16xi1> to vector<8x16xi1>
    %173 = arith.andi %171, %172 : vector<8x16xi1>
    %cst_35 = arith.constant -1.000000e+00 : f32
    %174 = vector.broadcast %cst_35 : f32 to vector<8x16xf32>
    %175 = arith.select %173, %166, %174 : vector<8x16xi1>, vector<8x16xf32>
    %176 = vector.shape_cast %175 : vector<8x16xf32> to vector<1x8x16xf32>
    %cst_36 = arith.constant dense<0xFF800000> : vector<1xf32>
    %177 = vector.multi_reduction <maximumf>, %176, %cst_36 [1, 2] : vector<1x8x16xf32> to vector<1xf32>
    %178 = vector.shape_cast %177 : vector<1xf32> to vector<1x1x1xf32>
    %179 = vector.extract %178[0, 0, 0] : f32 from vector<1x1x1xf32>
    %180 = vector.broadcast %179 : f32 to vector<8x16xf32>
    %181 = arith.cmpf oge, %175, %180 : vector<8x16xf32>
    %182 = arith.andi %173, %181 : vector<8x16xi1>
    %c-1_i32_37 = arith.constant -1 : i32
    %183 = vector.broadcast %c-1_i32_37 : i32 to vector<8x16xi32>
    %184 = arith.select %182, %8, %183 : vector<8x16xi1>, vector<8x16xi32>
    %185 = vector.shape_cast %184 : vector<8x16xi32> to vector<1x8x16xi32>
    %cst_38 = arith.constant dense<-2147483648> : vector<1xi32>
    %186 = vector.multi_reduction <maxsi>, %185, %cst_38 [1, 2] : vector<1x8x16xi32> to vector<1xi32>
    %187 = vector.shape_cast %186 : vector<1xi32> to vector<1x1x1xi32>
    %188 = vector.extract %187[0, 0, 0] : i32 from vector<1x1x1xi32>
    %189 = vector.broadcast %188 : i32 to vector<8x16xi32>
    %190 = arith.cmpi eq, %8, %189 : vector<8x16xi32>
    %cst_39 = arith.constant 1.000000e+00 : f32
    %cst_40 = arith.constant 0.000000e+00 : f32
    %191 = vector.broadcast %cst_39 : f32 to vector<8x16xf32>
    %192 = vector.broadcast %cst_40 : f32 to vector<8x16xf32>
    %193 = arith.select %190, %191, %192 : vector<8x16xi1>, vector<8x16xf32>
    %cst_41 = arith.constant dense<0xFF800000> : vector<8xf32>
    %194 = vector.multi_reduction <maximumf>, %193, %cst_41 [1] : vector<8x16xf32> to vector<8xf32>
    %cst_42 = arith.constant 0.000000e+00 : f32
    %195 = vector.broadcast %cst_42 : f32 to vector<8xf32>
    %196 = arith.cmpf ogt, %194, %195 : vector<8xf32>
    %197 = vector.shape_cast %196 : vector<8xi1> to vector<8x1xi1>
    %cst_43 = arith.constant 1.000000e+00 : f32
    %cst_44 = arith.constant 0.000000e+00 : f32
    %198 = vector.broadcast %cst_43 : f32 to vector<8x16xf32>
    %199 = vector.broadcast %cst_44 : f32 to vector<8x16xf32>
    %200 = arith.select %190, %198, %199 : vector<8x16xi1>, vector<8x16xf32>
    %cst_45 = arith.constant dense<0xFF800000> : vector<16xf32>
    %201 = vector.multi_reduction <maximumf>, %200, %cst_45 [0] : vector<8x16xf32> to vector<16xf32>
    %cst_46 = arith.constant 0.000000e+00 : f32
    %202 = vector.broadcast %cst_46 : f32 to vector<16xf32>
    %203 = arith.cmpf ogt, %201, %202 : vector<16xf32>
    %204 = vector.shape_cast %203 : vector<16xi1> to vector<1x16xi1>
    %c15_i32_47 = arith.constant 15 : i32
    %205 = arith.andi %188, %c15_i32_47 : i32
    %206 = vector.broadcast %205 : i32 to vector<8x1xi32>
    %207 = arith.cmpi eq, %10, %206 : vector<8x1xi32>
    %cst_48 = arith.constant 0.000000e+00 : f32
    %208 = vector.shape_cast %197 : vector<8x1xi1> to vector<8x1xi1>
    %209 = vector.broadcast %208 : vector<8x1xi1> to vector<8x16xi1>
    %210 = vector.broadcast %cst_48 : f32 to vector<8x16xf32>
    %211 = arith.select %209, %166, %210 : vector<8x16xi1>, vector<8x16xf32>
    %cst_49 = arith.constant 0.000000e+00 : f32
    %212 = vector.shape_cast %207 : vector<8x1xi1> to vector<8x1xi1>
    %213 = vector.broadcast %212 : vector<8x1xi1> to vector<8x16xi1>
    %214 = vector.broadcast %cst_49 : f32 to vector<8x16xf32>
    %215 = arith.select %213, %166, %214 : vector<8x16xi1>, vector<8x16xf32>
    %216 = tpu.concatenate %211, %215 in 1 : vector<8x16xf32>, vector<8x16xf32> -> vector<8x32xf32>
    %cst_50 = arith.constant dense<0.000000e+00> : vector<32xf32>
    %217 = vector.multi_reduction <add>, %216, %cst_50 [0] : vector<8x32xf32> to vector<32xf32>
    %218 = vector.shape_cast %217 : vector<32xf32> to vector<1x32xf32>
    %219 = vector.extract_strided_slice %218 {offsets = [0, 0], sizes = [1, 16], strides = [1, 1]} : vector<1x32xf32> to vector<1x16xf32>
    %220 = vector.extract_strided_slice %218 {offsets = [0, 16], sizes = [1, 16], strides = [1, 1]} : vector<1x32xf32> to vector<1x16xf32>
    %221 = vector.shape_cast %207 : vector<8x1xi1> to vector<8x1xi1>
    %222 = vector.broadcast %221 : vector<8x1xi1> to vector<8x16xi1>
    %223 = vector.shape_cast %219 : vector<1x16xf32> to vector<1x16xf32>
    %224 = vector.broadcast %223 : vector<1x16xf32> to vector<8x16xf32>
    %225 = arith.select %222, %224, %166 : vector<8x16xi1>, vector<8x16xf32>
    %226 = vector.shape_cast %197 : vector<8x1xi1> to vector<8x1xi1>
    %227 = vector.broadcast %226 : vector<8x1xi1> to vector<8x16xi1>
    %228 = vector.shape_cast %220 : vector<1x16xf32> to vector<1x16xf32>
    %229 = vector.broadcast %228 : vector<1x16xf32> to vector<8x16xf32>
    %230 = arith.select %227, %229, %225 : vector<8x16xi1>, vector<8x16xf32>
    %231 = arith.ori %167, %207 : vector<8x1xi1>
    %232 = arith.ori %168, %204 : vector<1x16xi1>
    %cst_51 = arith.constant dense<true> : vector<8x1xi1>
    %233 = arith.xori %231, %cst_51 : vector<8x1xi1>
    %cst_52 = arith.constant dense<true> : vector<1x16xi1>
    %234 = arith.xori %232, %cst_52 : vector<1x16xi1>
    %235 = vector.broadcast %233 : vector<8x1xi1> to vector<8x16xi1>
    %236 = vector.broadcast %234 : vector<1x16xi1> to vector<8x16xi1>
    %237 = arith.andi %235, %236 : vector<8x16xi1>
    %cst_53 = arith.constant -1.000000e+00 : f32
    %238 = vector.broadcast %cst_53 : f32 to vector<8x16xf32>
    %239 = arith.select %237, %230, %238 : vector<8x16xi1>, vector<8x16xf32>
    %240 = vector.shape_cast %239 : vector<8x16xf32> to vector<1x8x16xf32>
    %cst_54 = arith.constant dense<0xFF800000> : vector<1xf32>
    %241 = vector.multi_reduction <maximumf>, %240, %cst_54 [1, 2] : vector<1x8x16xf32> to vector<1xf32>
    %242 = vector.shape_cast %241 : vector<1xf32> to vector<1x1x1xf32>
    %243 = vector.extract %242[0, 0, 0] : f32 from vector<1x1x1xf32>
    %244 = vector.broadcast %243 : f32 to vector<8x16xf32>
    %245 = arith.cmpf oge, %239, %244 : vector<8x16xf32>
    %246 = arith.andi %237, %245 : vector<8x16xi1>
    %c-1_i32_55 = arith.constant -1 : i32
    %247 = vector.broadcast %c-1_i32_55 : i32 to vector<8x16xi32>
    %248 = arith.select %246, %8, %247 : vector<8x16xi1>, vector<8x16xi32>
    %249 = vector.shape_cast %248 : vector<8x16xi32> to vector<1x8x16xi32>
    %cst_56 = arith.constant dense<-2147483648> : vector<1xi32>
    %250 = vector.multi_reduction <maxsi>, %249, %cst_56 [1, 2] : vector<1x8x16xi32> to vector<1xi32>
    %251 = vector.shape_cast %250 : vector<1xi32> to vector<1x1x1xi32>
    %252 = vector.extract %251[0, 0, 0] : i32 from vector<1x1x1xi32>
    %253 = vector.broadcast %252 : i32 to vector<8x16xi32>
    %254 = arith.cmpi eq, %8, %253 : vector<8x16xi32>
    %cst_57 = arith.constant 1.000000e+00 : f32
    %cst_58 = arith.constant 0.000000e+00 : f32
    %255 = vector.broadcast %cst_57 : f32 to vector<8x16xf32>
    %256 = vector.broadcast %cst_58 : f32 to vector<8x16xf32>
    %257 = arith.select %254, %255, %256 : vector<8x16xi1>, vector<8x16xf32>
    %cst_59 = arith.constant dense<0xFF800000> : vector<8xf32>
    %258 = vector.multi_reduction <maximumf>, %257, %cst_59 [1] : vector<8x16xf32> to vector<8xf32>
    %cst_60 = arith.constant 0.000000e+00 : f32
    %259 = vector.broadcast %cst_60 : f32 to vector<8xf32>
    %260 = arith.cmpf ogt, %258, %259 : vector<8xf32>
    %261 = vector.shape_cast %260 : vector<8xi1> to vector<8x1xi1>
    %cst_61 = arith.constant 1.000000e+00 : f32
    %cst_62 = arith.constant 0.000000e+00 : f32
    %262 = vector.broadcast %cst_61 : f32 to vector<8x16xf32>
    %263 = vector.broadcast %cst_62 : f32 to vector<8x16xf32>
    %264 = arith.select %254, %262, %263 : vector<8x16xi1>, vector<8x16xf32>
    %cst_63 = arith.constant dense<0xFF800000> : vector<16xf32>
    %265 = vector.multi_reduction <maximumf>, %264, %cst_63 [0] : vector<8x16xf32> to vector<16xf32>
    %cst_64 = arith.constant 0.000000e+00 : f32
    %266 = vector.broadcast %cst_64 : f32 to vector<16xf32>
    %267 = arith.cmpf ogt, %265, %266 : vector<16xf32>
    %268 = vector.shape_cast %267 : vector<16xi1> to vector<1x16xi1>
    %c15_i32_65 = arith.constant 15 : i32
    %269 = arith.andi %252, %c15_i32_65 : i32
    %270 = vector.broadcast %269 : i32 to vector<8x1xi32>
    %271 = arith.cmpi eq, %10, %270 : vector<8x1xi32>
    %cst_66 = arith.constant 0.000000e+00 : f32
    %272 = vector.shape_cast %261 : vector<8x1xi1> to vector<8x1xi1>
    %273 = vector.broadcast %272 : vector<8x1xi1> to vector<8x16xi1>
    %274 = vector.broadcast %cst_66 : f32 to vector<8x16xf32>
    %275 = arith.select %273, %230, %274 : vector<8x16xi1>, vector<8x16xf32>
    %cst_67 = arith.constant 0.000000e+00 : f32
    %276 = vector.shape_cast %271 : vector<8x1xi1> to vector<8x1xi1>
    %277 = vector.broadcast %276 : vector<8x1xi1> to vector<8x16xi1>
    %278 = vector.broadcast %cst_67 : f32 to vector<8x16xf32>
    %279 = arith.select %277, %230, %278 : vector<8x16xi1>, vector<8x16xf32>
    %280 = tpu.concatenate %275, %279 in 1 : vector<8x16xf32>, vector<8x16xf32> -> vector<8x32xf32>
    %cst_68 = arith.constant dense<0.000000e+00> : vector<32xf32>
    %281 = vector.multi_reduction <add>, %280, %cst_68 [0] : vector<8x32xf32> to vector<32xf32>
    %282 = vector.shape_cast %281 : vector<32xf32> to vector<1x32xf32>
    %283 = vector.extract_strided_slice %282 {offsets = [0, 0], sizes = [1, 16], strides = [1, 1]} : vector<1x32xf32> to vector<1x16xf32>
    %284 = vector.extract_strided_slice %282 {offsets = [0, 16], sizes = [1, 16], strides = [1, 1]} : vector<1x32xf32> to vector<1x16xf32>
    %285 = vector.shape_cast %271 : vector<8x1xi1> to vector<8x1xi1>
    %286 = vector.broadcast %285 : vector<8x1xi1> to vector<8x16xi1>
    %287 = vector.shape_cast %283 : vector<1x16xf32> to vector<1x16xf32>
    %288 = vector.broadcast %287 : vector<1x16xf32> to vector<8x16xf32>
    %289 = arith.select %286, %288, %230 : vector<8x16xi1>, vector<8x16xf32>
    %290 = vector.shape_cast %261 : vector<8x1xi1> to vector<8x1xi1>
    %291 = vector.broadcast %290 : vector<8x1xi1> to vector<8x16xi1>
    %292 = vector.shape_cast %284 : vector<1x16xf32> to vector<1x16xf32>
    %293 = vector.broadcast %292 : vector<1x16xf32> to vector<8x16xf32>
    %294 = arith.select %291, %293, %289 : vector<8x16xi1>, vector<8x16xf32>
    %295 = arith.ori %231, %271 : vector<8x1xi1>
    %296 = arith.ori %232, %268 : vector<1x16xi1>
    %cst_69 = arith.constant dense<true> : vector<8x1xi1>
    %297 = arith.xori %295, %cst_69 : vector<8x1xi1>
    %cst_70 = arith.constant dense<true> : vector<1x16xi1>
    %298 = arith.xori %296, %cst_70 : vector<1x16xi1>
    %299 = vector.broadcast %297 : vector<8x1xi1> to vector<8x16xi1>
    %300 = vector.broadcast %298 : vector<1x16xi1> to vector<8x16xi1>
    %301 = arith.andi %299, %300 : vector<8x16xi1>
    %cst_71 = arith.constant -1.000000e+00 : f32
    %302 = vector.broadcast %cst_71 : f32 to vector<8x16xf32>
    %303 = arith.select %301, %294, %302 : vector<8x16xi1>, vector<8x16xf32>
    %304 = vector.shape_cast %303 : vector<8x16xf32> to vector<1x8x16xf32>
    %cst_72 = arith.constant dense<0xFF800000> : vector<1xf32>
    %305 = vector.multi_reduction <maximumf>, %304, %cst_72 [1, 2] : vector<1x8x16xf32> to vector<1xf32>
    %306 = vector.shape_cast %305 : vector<1xf32> to vector<1x1x1xf32>
    %307 = vector.extract %306[0, 0, 0] : f32 from vector<1x1x1xf32>
    %308 = vector.broadcast %307 : f32 to vector<8x16xf32>
    %309 = arith.cmpf oge, %303, %308 : vector<8x16xf32>
    %310 = arith.andi %301, %309 : vector<8x16xi1>
    %c-1_i32_73 = arith.constant -1 : i32
    %311 = vector.broadcast %c-1_i32_73 : i32 to vector<8x16xi32>
    %312 = arith.select %310, %8, %311 : vector<8x16xi1>, vector<8x16xi32>
    %313 = vector.shape_cast %312 : vector<8x16xi32> to vector<1x8x16xi32>
    %cst_74 = arith.constant dense<-2147483648> : vector<1xi32>
    %314 = vector.multi_reduction <maxsi>, %313, %cst_74 [1, 2] : vector<1x8x16xi32> to vector<1xi32>
    %315 = vector.shape_cast %314 : vector<1xi32> to vector<1x1x1xi32>
    %316 = vector.extract %315[0, 0, 0] : i32 from vector<1x1x1xi32>
    %317 = vector.broadcast %316 : i32 to vector<8x16xi32>
    %318 = arith.cmpi eq, %8, %317 : vector<8x16xi32>
    %cst_75 = arith.constant 1.000000e+00 : f32
    %cst_76 = arith.constant 0.000000e+00 : f32
    %319 = vector.broadcast %cst_75 : f32 to vector<8x16xf32>
    %320 = vector.broadcast %cst_76 : f32 to vector<8x16xf32>
    %321 = arith.select %318, %319, %320 : vector<8x16xi1>, vector<8x16xf32>
    %cst_77 = arith.constant dense<0xFF800000> : vector<8xf32>
    %322 = vector.multi_reduction <maximumf>, %321, %cst_77 [1] : vector<8x16xf32> to vector<8xf32>
    %cst_78 = arith.constant 0.000000e+00 : f32
    %323 = vector.broadcast %cst_78 : f32 to vector<8xf32>
    %324 = arith.cmpf ogt, %322, %323 : vector<8xf32>
    %325 = vector.shape_cast %324 : vector<8xi1> to vector<8x1xi1>
    %cst_79 = arith.constant 1.000000e+00 : f32
    %cst_80 = arith.constant 0.000000e+00 : f32
    %326 = vector.broadcast %cst_79 : f32 to vector<8x16xf32>
    %327 = vector.broadcast %cst_80 : f32 to vector<8x16xf32>
    %328 = arith.select %318, %326, %327 : vector<8x16xi1>, vector<8x16xf32>
    %cst_81 = arith.constant dense<0xFF800000> : vector<16xf32>
    %329 = vector.multi_reduction <maximumf>, %328, %cst_81 [0] : vector<8x16xf32> to vector<16xf32>
    %cst_82 = arith.constant 0.000000e+00 : f32
    %330 = vector.broadcast %cst_82 : f32 to vector<16xf32>
    %331 = arith.cmpf ogt, %329, %330 : vector<16xf32>
    %332 = vector.shape_cast %331 : vector<16xi1> to vector<1x16xi1>
    %c15_i32_83 = arith.constant 15 : i32
    %333 = arith.andi %316, %c15_i32_83 : i32
    %334 = vector.broadcast %333 : i32 to vector<8x1xi32>
    %335 = arith.cmpi eq, %10, %334 : vector<8x1xi32>
    %cst_84 = arith.constant 0.000000e+00 : f32
    %336 = vector.shape_cast %325 : vector<8x1xi1> to vector<8x1xi1>
    %337 = vector.broadcast %336 : vector<8x1xi1> to vector<8x16xi1>
    %338 = vector.broadcast %cst_84 : f32 to vector<8x16xf32>
    %339 = arith.select %337, %294, %338 : vector<8x16xi1>, vector<8x16xf32>
    %cst_85 = arith.constant 0.000000e+00 : f32
    %340 = vector.shape_cast %335 : vector<8x1xi1> to vector<8x1xi1>
    %341 = vector.broadcast %340 : vector<8x1xi1> to vector<8x16xi1>
    %342 = vector.broadcast %cst_85 : f32 to vector<8x16xf32>
    %343 = arith.select %341, %294, %342 : vector<8x16xi1>, vector<8x16xf32>
    %344 = tpu.concatenate %339, %343 in 1 : vector<8x16xf32>, vector<8x16xf32> -> vector<8x32xf32>
    %cst_86 = arith.constant dense<0.000000e+00> : vector<32xf32>
    %345 = vector.multi_reduction <add>, %344, %cst_86 [0] : vector<8x32xf32> to vector<32xf32>
    %346 = vector.shape_cast %345 : vector<32xf32> to vector<1x32xf32>
    %347 = vector.extract_strided_slice %346 {offsets = [0, 0], sizes = [1, 16], strides = [1, 1]} : vector<1x32xf32> to vector<1x16xf32>
    %348 = vector.extract_strided_slice %346 {offsets = [0, 16], sizes = [1, 16], strides = [1, 1]} : vector<1x32xf32> to vector<1x16xf32>
    %349 = vector.shape_cast %335 : vector<8x1xi1> to vector<8x1xi1>
    %350 = vector.broadcast %349 : vector<8x1xi1> to vector<8x16xi1>
    %351 = vector.shape_cast %347 : vector<1x16xf32> to vector<1x16xf32>
    %352 = vector.broadcast %351 : vector<1x16xf32> to vector<8x16xf32>
    %353 = arith.select %350, %352, %294 : vector<8x16xi1>, vector<8x16xf32>
    %354 = vector.shape_cast %325 : vector<8x1xi1> to vector<8x1xi1>
    %355 = vector.broadcast %354 : vector<8x1xi1> to vector<8x16xi1>
    %356 = vector.shape_cast %348 : vector<1x16xf32> to vector<1x16xf32>
    %357 = vector.broadcast %356 : vector<1x16xf32> to vector<8x16xf32>
    %358 = arith.select %355, %357, %353 : vector<8x16xi1>, vector<8x16xf32>
    %359 = arith.ori %295, %335 : vector<8x1xi1>
    %360 = arith.ori %296, %332 : vector<1x16xi1>
    %cst_87 = arith.constant dense<true> : vector<8x1xi1>
    %361 = arith.xori %359, %cst_87 : vector<8x1xi1>
    %cst_88 = arith.constant dense<true> : vector<1x16xi1>
    %362 = arith.xori %360, %cst_88 : vector<1x16xi1>
    %363 = vector.broadcast %361 : vector<8x1xi1> to vector<8x16xi1>
    %364 = vector.broadcast %362 : vector<1x16xi1> to vector<8x16xi1>
    %365 = arith.andi %363, %364 : vector<8x16xi1>
    %cst_89 = arith.constant -1.000000e+00 : f32
    %366 = vector.broadcast %cst_89 : f32 to vector<8x16xf32>
    %367 = arith.select %365, %358, %366 : vector<8x16xi1>, vector<8x16xf32>
    %368 = vector.shape_cast %367 : vector<8x16xf32> to vector<1x8x16xf32>
    %cst_90 = arith.constant dense<0xFF800000> : vector<1xf32>
    %369 = vector.multi_reduction <maximumf>, %368, %cst_90 [1, 2] : vector<1x8x16xf32> to vector<1xf32>
    %370 = vector.shape_cast %369 : vector<1xf32> to vector<1x1x1xf32>
    %371 = vector.extract %370[0, 0, 0] : f32 from vector<1x1x1xf32>
    %372 = vector.broadcast %371 : f32 to vector<8x16xf32>
    %373 = arith.cmpf oge, %367, %372 : vector<8x16xf32>
    %374 = arith.andi %365, %373 : vector<8x16xi1>
    %c-1_i32_91 = arith.constant -1 : i32
    %375 = vector.broadcast %c-1_i32_91 : i32 to vector<8x16xi32>
    %376 = arith.select %374, %8, %375 : vector<8x16xi1>, vector<8x16xi32>
    %377 = vector.shape_cast %376 : vector<8x16xi32> to vector<1x8x16xi32>
    %cst_92 = arith.constant dense<-2147483648> : vector<1xi32>
    %378 = vector.multi_reduction <maxsi>, %377, %cst_92 [1, 2] : vector<1x8x16xi32> to vector<1xi32>
    %379 = vector.shape_cast %378 : vector<1xi32> to vector<1x1x1xi32>
    %380 = vector.extract %379[0, 0, 0] : i32 from vector<1x1x1xi32>
    %381 = vector.broadcast %380 : i32 to vector<8x16xi32>
    %382 = arith.cmpi eq, %8, %381 : vector<8x16xi32>
    %cst_93 = arith.constant 1.000000e+00 : f32
    %cst_94 = arith.constant 0.000000e+00 : f32
    %383 = vector.broadcast %cst_93 : f32 to vector<8x16xf32>
    %384 = vector.broadcast %cst_94 : f32 to vector<8x16xf32>
    %385 = arith.select %382, %383, %384 : vector<8x16xi1>, vector<8x16xf32>
    %cst_95 = arith.constant dense<0xFF800000> : vector<8xf32>
    %386 = vector.multi_reduction <maximumf>, %385, %cst_95 [1] : vector<8x16xf32> to vector<8xf32>
    %cst_96 = arith.constant 0.000000e+00 : f32
    %387 = vector.broadcast %cst_96 : f32 to vector<8xf32>
    %388 = arith.cmpf ogt, %386, %387 : vector<8xf32>
    %389 = vector.shape_cast %388 : vector<8xi1> to vector<8x1xi1>
    %cst_97 = arith.constant 1.000000e+00 : f32
    %cst_98 = arith.constant 0.000000e+00 : f32
    %390 = vector.broadcast %cst_97 : f32 to vector<8x16xf32>
    %391 = vector.broadcast %cst_98 : f32 to vector<8x16xf32>
    %392 = arith.select %382, %390, %391 : vector<8x16xi1>, vector<8x16xf32>
    %cst_99 = arith.constant dense<0xFF800000> : vector<16xf32>
    %393 = vector.multi_reduction <maximumf>, %392, %cst_99 [0] : vector<8x16xf32> to vector<16xf32>
    %cst_100 = arith.constant 0.000000e+00 : f32
    %394 = vector.broadcast %cst_100 : f32 to vector<16xf32>
    %395 = arith.cmpf ogt, %393, %394 : vector<16xf32>
    %396 = vector.shape_cast %395 : vector<16xi1> to vector<1x16xi1>
    %c15_i32_101 = arith.constant 15 : i32
    %397 = arith.andi %380, %c15_i32_101 : i32
    %398 = vector.broadcast %397 : i32 to vector<8x1xi32>
    %399 = arith.cmpi eq, %10, %398 : vector<8x1xi32>
    %cst_102 = arith.constant 0.000000e+00 : f32
    %400 = vector.shape_cast %389 : vector<8x1xi1> to vector<8x1xi1>
    %401 = vector.broadcast %400 : vector<8x1xi1> to vector<8x16xi1>
    %402 = vector.broadcast %cst_102 : f32 to vector<8x16xf32>
    %403 = arith.select %401, %358, %402 : vector<8x16xi1>, vector<8x16xf32>
    %cst_103 = arith.constant 0.000000e+00 : f32
    %404 = vector.shape_cast %399 : vector<8x1xi1> to vector<8x1xi1>
    %405 = vector.broadcast %404 : vector<8x1xi1> to vector<8x16xi1>
    %406 = vector.broadcast %cst_103 : f32 to vector<8x16xf32>
    %407 = arith.select %405, %358, %406 : vector<8x16xi1>, vector<8x16xf32>
    %408 = tpu.concatenate %403, %407 in 1 : vector<8x16xf32>, vector<8x16xf32> -> vector<8x32xf32>
    %cst_104 = arith.constant dense<0.000000e+00> : vector<32xf32>
    %409 = vector.multi_reduction <add>, %408, %cst_104 [0] : vector<8x32xf32> to vector<32xf32>
    %410 = vector.shape_cast %409 : vector<32xf32> to vector<1x32xf32>
    %411 = vector.extract_strided_slice %410 {offsets = [0, 0], sizes = [1, 16], strides = [1, 1]} : vector<1x32xf32> to vector<1x16xf32>
    %412 = vector.extract_strided_slice %410 {offsets = [0, 16], sizes = [1, 16], strides = [1, 1]} : vector<1x32xf32> to vector<1x16xf32>
    %413 = vector.shape_cast %399 : vector<8x1xi1> to vector<8x1xi1>
    %414 = vector.broadcast %413 : vector<8x1xi1> to vector<8x16xi1>
    %415 = vector.shape_cast %411 : vector<1x16xf32> to vector<1x16xf32>
    %416 = vector.broadcast %415 : vector<1x16xf32> to vector<8x16xf32>
    %417 = arith.select %414, %416, %358 : vector<8x16xi1>, vector<8x16xf32>
    %418 = vector.shape_cast %389 : vector<8x1xi1> to vector<8x1xi1>
    %419 = vector.broadcast %418 : vector<8x1xi1> to vector<8x16xi1>
    %420 = vector.shape_cast %412 : vector<1x16xf32> to vector<1x16xf32>
    %421 = vector.broadcast %420 : vector<1x16xf32> to vector<8x16xf32>
    %422 = arith.select %419, %421, %417 : vector<8x16xi1>, vector<8x16xf32>
    %423 = arith.ori %359, %399 : vector<8x1xi1>
    %424 = arith.ori %360, %396 : vector<1x16xi1>
    %cst_105 = arith.constant dense<true> : vector<8x1xi1>
    %425 = arith.xori %423, %cst_105 : vector<8x1xi1>
    %cst_106 = arith.constant dense<true> : vector<1x16xi1>
    %426 = arith.xori %424, %cst_106 : vector<1x16xi1>
    %427 = vector.broadcast %425 : vector<8x1xi1> to vector<8x16xi1>
    %428 = vector.broadcast %426 : vector<1x16xi1> to vector<8x16xi1>
    %429 = arith.andi %427, %428 : vector<8x16xi1>
    %cst_107 = arith.constant -1.000000e+00 : f32
    %430 = vector.broadcast %cst_107 : f32 to vector<8x16xf32>
    %431 = arith.select %429, %422, %430 : vector<8x16xi1>, vector<8x16xf32>
    %432 = vector.shape_cast %431 : vector<8x16xf32> to vector<1x8x16xf32>
    %cst_108 = arith.constant dense<0xFF800000> : vector<1xf32>
    %433 = vector.multi_reduction <maximumf>, %432, %cst_108 [1, 2] : vector<1x8x16xf32> to vector<1xf32>
    %434 = vector.shape_cast %433 : vector<1xf32> to vector<1x1x1xf32>
    %435 = vector.extract %434[0, 0, 0] : f32 from vector<1x1x1xf32>
    %436 = vector.broadcast %435 : f32 to vector<8x16xf32>
    %437 = arith.cmpf oge, %431, %436 : vector<8x16xf32>
    %438 = arith.andi %429, %437 : vector<8x16xi1>
    %c-1_i32_109 = arith.constant -1 : i32
    %439 = vector.broadcast %c-1_i32_109 : i32 to vector<8x16xi32>
    %440 = arith.select %438, %8, %439 : vector<8x16xi1>, vector<8x16xi32>
    %441 = vector.shape_cast %440 : vector<8x16xi32> to vector<1x8x16xi32>
    %cst_110 = arith.constant dense<-2147483648> : vector<1xi32>
    %442 = vector.multi_reduction <maxsi>, %441, %cst_110 [1, 2] : vector<1x8x16xi32> to vector<1xi32>
    %443 = vector.shape_cast %442 : vector<1xi32> to vector<1x1x1xi32>
    %444 = vector.extract %443[0, 0, 0] : i32 from vector<1x1x1xi32>
    %445 = vector.broadcast %444 : i32 to vector<8x16xi32>
    %446 = arith.cmpi eq, %8, %445 : vector<8x16xi32>
    %cst_111 = arith.constant 1.000000e+00 : f32
    %cst_112 = arith.constant 0.000000e+00 : f32
    %447 = vector.broadcast %cst_111 : f32 to vector<8x16xf32>
    %448 = vector.broadcast %cst_112 : f32 to vector<8x16xf32>
    %449 = arith.select %446, %447, %448 : vector<8x16xi1>, vector<8x16xf32>
    %cst_113 = arith.constant dense<0xFF800000> : vector<8xf32>
    %450 = vector.multi_reduction <maximumf>, %449, %cst_113 [1] : vector<8x16xf32> to vector<8xf32>
    %cst_114 = arith.constant 0.000000e+00 : f32
    %451 = vector.broadcast %cst_114 : f32 to vector<8xf32>
    %452 = arith.cmpf ogt, %450, %451 : vector<8xf32>
    %453 = vector.shape_cast %452 : vector<8xi1> to vector<8x1xi1>
    %cst_115 = arith.constant 1.000000e+00 : f32
    %cst_116 = arith.constant 0.000000e+00 : f32
    %454 = vector.broadcast %cst_115 : f32 to vector<8x16xf32>
    %455 = vector.broadcast %cst_116 : f32 to vector<8x16xf32>
    %456 = arith.select %446, %454, %455 : vector<8x16xi1>, vector<8x16xf32>
    %cst_117 = arith.constant dense<0xFF800000> : vector<16xf32>
    %457 = vector.multi_reduction <maximumf>, %456, %cst_117 [0] : vector<8x16xf32> to vector<16xf32>
    %cst_118 = arith.constant 0.000000e+00 : f32
    %458 = vector.broadcast %cst_118 : f32 to vector<16xf32>
    %459 = arith.cmpf ogt, %457, %458 : vector<16xf32>
    %460 = vector.shape_cast %459 : vector<16xi1> to vector<1x16xi1>
    %c15_i32_119 = arith.constant 15 : i32
    %461 = arith.andi %444, %c15_i32_119 : i32
    %462 = vector.broadcast %461 : i32 to vector<8x1xi32>
    %463 = arith.cmpi eq, %10, %462 : vector<8x1xi32>
    %cst_120 = arith.constant 0.000000e+00 : f32
    %464 = vector.shape_cast %453 : vector<8x1xi1> to vector<8x1xi1>
    %465 = vector.broadcast %464 : vector<8x1xi1> to vector<8x16xi1>
    %466 = vector.broadcast %cst_120 : f32 to vector<8x16xf32>
    %467 = arith.select %465, %422, %466 : vector<8x16xi1>, vector<8x16xf32>
    %cst_121 = arith.constant 0.000000e+00 : f32
    %468 = vector.shape_cast %463 : vector<8x1xi1> to vector<8x1xi1>
    %469 = vector.broadcast %468 : vector<8x1xi1> to vector<8x16xi1>
    %470 = vector.broadcast %cst_121 : f32 to vector<8x16xf32>
    %471 = arith.select %469, %422, %470 : vector<8x16xi1>, vector<8x16xf32>
    %472 = tpu.concatenate %467, %471 in 1 : vector<8x16xf32>, vector<8x16xf32> -> vector<8x32xf32>
    %cst_122 = arith.constant dense<0.000000e+00> : vector<32xf32>
    %473 = vector.multi_reduction <add>, %472, %cst_122 [0] : vector<8x32xf32> to vector<32xf32>
    %474 = vector.shape_cast %473 : vector<32xf32> to vector<1x32xf32>
    %475 = vector.extract_strided_slice %474 {offsets = [0, 0], sizes = [1, 16], strides = [1, 1]} : vector<1x32xf32> to vector<1x16xf32>
    %476 = vector.extract_strided_slice %474 {offsets = [0, 16], sizes = [1, 16], strides = [1, 1]} : vector<1x32xf32> to vector<1x16xf32>
    %477 = vector.shape_cast %463 : vector<8x1xi1> to vector<8x1xi1>
    %478 = vector.broadcast %477 : vector<8x1xi1> to vector<8x16xi1>
    %479 = vector.shape_cast %475 : vector<1x16xf32> to vector<1x16xf32>
    %480 = vector.broadcast %479 : vector<1x16xf32> to vector<8x16xf32>
    %481 = arith.select %478, %480, %422 : vector<8x16xi1>, vector<8x16xf32>
    %482 = vector.shape_cast %453 : vector<8x1xi1> to vector<8x1xi1>
    %483 = vector.broadcast %482 : vector<8x1xi1> to vector<8x16xi1>
    %484 = vector.shape_cast %476 : vector<1x16xf32> to vector<1x16xf32>
    %485 = vector.broadcast %484 : vector<1x16xf32> to vector<8x16xf32>
    %486 = arith.select %483, %485, %481 : vector<8x16xi1>, vector<8x16xf32>
    %487 = arith.ori %423, %463 : vector<8x1xi1>
    %488 = arith.ori %424, %460 : vector<1x16xi1>
    %cst_123 = arith.constant dense<true> : vector<8x1xi1>
    %489 = arith.xori %487, %cst_123 : vector<8x1xi1>
    %cst_124 = arith.constant dense<true> : vector<1x16xi1>
    %490 = arith.xori %488, %cst_124 : vector<1x16xi1>
    %491 = vector.broadcast %489 : vector<8x1xi1> to vector<8x16xi1>
    %492 = vector.broadcast %490 : vector<1x16xi1> to vector<8x16xi1>
    %493 = arith.andi %491, %492 : vector<8x16xi1>
    %cst_125 = arith.constant -1.000000e+00 : f32
    %494 = vector.broadcast %cst_125 : f32 to vector<8x16xf32>
    %495 = arith.select %493, %486, %494 : vector<8x16xi1>, vector<8x16xf32>
    %496 = vector.shape_cast %495 : vector<8x16xf32> to vector<1x8x16xf32>
    %cst_126 = arith.constant dense<0xFF800000> : vector<1xf32>
    %497 = vector.multi_reduction <maximumf>, %496, %cst_126 [1, 2] : vector<1x8x16xf32> to vector<1xf32>
    %498 = vector.shape_cast %497 : vector<1xf32> to vector<1x1x1xf32>
    %499 = vector.extract %498[0, 0, 0] : f32 from vector<1x1x1xf32>
    %500 = vector.broadcast %499 : f32 to vector<8x16xf32>
    %501 = arith.cmpf oge, %495, %500 : vector<8x16xf32>
    %502 = arith.andi %493, %501 : vector<8x16xi1>
    %c-1_i32_127 = arith.constant -1 : i32
    %503 = vector.broadcast %c-1_i32_127 : i32 to vector<8x16xi32>
    %504 = arith.select %502, %8, %503 : vector<8x16xi1>, vector<8x16xi32>
    %505 = vector.shape_cast %504 : vector<8x16xi32> to vector<1x8x16xi32>
    %cst_128 = arith.constant dense<-2147483648> : vector<1xi32>
    %506 = vector.multi_reduction <maxsi>, %505, %cst_128 [1, 2] : vector<1x8x16xi32> to vector<1xi32>
    %507 = vector.shape_cast %506 : vector<1xi32> to vector<1x1x1xi32>
    %508 = vector.extract %507[0, 0, 0] : i32 from vector<1x1x1xi32>
    %509 = vector.broadcast %508 : i32 to vector<8x16xi32>
    %510 = arith.cmpi eq, %8, %509 : vector<8x16xi32>
    %cst_129 = arith.constant 1.000000e+00 : f32
    %cst_130 = arith.constant 0.000000e+00 : f32
    %511 = vector.broadcast %cst_129 : f32 to vector<8x16xf32>
    %512 = vector.broadcast %cst_130 : f32 to vector<8x16xf32>
    %513 = arith.select %510, %511, %512 : vector<8x16xi1>, vector<8x16xf32>
    %cst_131 = arith.constant dense<0xFF800000> : vector<8xf32>
    %514 = vector.multi_reduction <maximumf>, %513, %cst_131 [1] : vector<8x16xf32> to vector<8xf32>
    %cst_132 = arith.constant 0.000000e+00 : f32
    %515 = vector.broadcast %cst_132 : f32 to vector<8xf32>
    %516 = arith.cmpf ogt, %514, %515 : vector<8xf32>
    %517 = vector.shape_cast %516 : vector<8xi1> to vector<8x1xi1>
    %cst_133 = arith.constant 1.000000e+00 : f32
    %cst_134 = arith.constant 0.000000e+00 : f32
    %518 = vector.broadcast %cst_133 : f32 to vector<8x16xf32>
    %519 = vector.broadcast %cst_134 : f32 to vector<8x16xf32>
    %520 = arith.select %510, %518, %519 : vector<8x16xi1>, vector<8x16xf32>
    %cst_135 = arith.constant dense<0xFF800000> : vector<16xf32>
    %521 = vector.multi_reduction <maximumf>, %520, %cst_135 [0] : vector<8x16xf32> to vector<16xf32>
    %cst_136 = arith.constant 0.000000e+00 : f32
    %522 = vector.broadcast %cst_136 : f32 to vector<16xf32>
    %523 = arith.cmpf ogt, %521, %522 : vector<16xf32>
    %524 = vector.shape_cast %523 : vector<16xi1> to vector<1x16xi1>
    %c15_i32_137 = arith.constant 15 : i32
    %525 = arith.andi %508, %c15_i32_137 : i32
    %526 = vector.broadcast %525 : i32 to vector<8x1xi32>
    %527 = arith.cmpi eq, %10, %526 : vector<8x1xi32>
    %cst_138 = arith.constant 0.000000e+00 : f32
    %528 = vector.shape_cast %517 : vector<8x1xi1> to vector<8x1xi1>
    %529 = vector.broadcast %528 : vector<8x1xi1> to vector<8x16xi1>
    %530 = vector.broadcast %cst_138 : f32 to vector<8x16xf32>
    %531 = arith.select %529, %486, %530 : vector<8x16xi1>, vector<8x16xf32>
    %cst_139 = arith.constant 0.000000e+00 : f32
    %532 = vector.shape_cast %527 : vector<8x1xi1> to vector<8x1xi1>
    %533 = vector.broadcast %532 : vector<8x1xi1> to vector<8x16xi1>
    %534 = vector.broadcast %cst_139 : f32 to vector<8x16xf32>
    %535 = arith.select %533, %486, %534 : vector<8x16xi1>, vector<8x16xf32>
    %536 = tpu.concatenate %531, %535 in 1 : vector<8x16xf32>, vector<8x16xf32> -> vector<8x32xf32>
    %cst_140 = arith.constant dense<0.000000e+00> : vector<32xf32>
    %537 = vector.multi_reduction <add>, %536, %cst_140 [0] : vector<8x32xf32> to vector<32xf32>
    %538 = vector.shape_cast %537 : vector<32xf32> to vector<1x32xf32>
    %539 = vector.extract_strided_slice %538 {offsets = [0, 0], sizes = [1, 16], strides = [1, 1]} : vector<1x32xf32> to vector<1x16xf32>
    %540 = vector.extract_strided_slice %538 {offsets = [0, 16], sizes = [1, 16], strides = [1, 1]} : vector<1x32xf32> to vector<1x16xf32>
    %541 = vector.shape_cast %527 : vector<8x1xi1> to vector<8x1xi1>
    %542 = vector.broadcast %541 : vector<8x1xi1> to vector<8x16xi1>
    %543 = vector.shape_cast %539 : vector<1x16xf32> to vector<1x16xf32>
    %544 = vector.broadcast %543 : vector<1x16xf32> to vector<8x16xf32>
    %545 = arith.select %542, %544, %486 : vector<8x16xi1>, vector<8x16xf32>
    %546 = vector.shape_cast %517 : vector<8x1xi1> to vector<8x1xi1>
    %547 = vector.broadcast %546 : vector<8x1xi1> to vector<8x16xi1>
    %548 = vector.shape_cast %540 : vector<1x16xf32> to vector<1x16xf32>
    %549 = vector.broadcast %548 : vector<1x16xf32> to vector<8x16xf32>
    %550 = arith.select %547, %549, %545 : vector<8x16xi1>, vector<8x16xf32>
    %551 = arith.ori %487, %527 : vector<8x1xi1>
    %552 = arith.ori %488, %524 : vector<1x16xi1>
    %cst_141 = arith.constant dense<true> : vector<8x1xi1>
    %553 = arith.xori %551, %cst_141 : vector<8x1xi1>
    %cst_142 = arith.constant dense<true> : vector<1x16xi1>
    %554 = arith.xori %552, %cst_142 : vector<1x16xi1>
    %555 = vector.broadcast %553 : vector<8x1xi1> to vector<8x16xi1>
    %556 = vector.broadcast %554 : vector<1x16xi1> to vector<8x16xi1>
    %557 = arith.andi %555, %556 : vector<8x16xi1>
    %cst_143 = arith.constant -1.000000e+00 : f32
    %558 = vector.broadcast %cst_143 : f32 to vector<8x16xf32>
    %559 = arith.select %557, %550, %558 : vector<8x16xi1>, vector<8x16xf32>
    %560 = vector.shape_cast %559 : vector<8x16xf32> to vector<1x8x16xf32>
    %cst_144 = arith.constant dense<0xFF800000> : vector<1xf32>
    %561 = vector.multi_reduction <maximumf>, %560, %cst_144 [1, 2] : vector<1x8x16xf32> to vector<1xf32>
    %562 = vector.shape_cast %561 : vector<1xf32> to vector<1x1x1xf32>
    %563 = vector.extract %562[0, 0, 0] : f32 from vector<1x1x1xf32>
    %564 = vector.broadcast %563 : f32 to vector<8x16xf32>
    %565 = arith.cmpf oge, %559, %564 : vector<8x16xf32>
    %566 = arith.andi %557, %565 : vector<8x16xi1>
    %c-1_i32_145 = arith.constant -1 : i32
    %567 = vector.broadcast %c-1_i32_145 : i32 to vector<8x16xi32>
    %568 = arith.select %566, %8, %567 : vector<8x16xi1>, vector<8x16xi32>
    %569 = vector.shape_cast %568 : vector<8x16xi32> to vector<1x8x16xi32>
    %cst_146 = arith.constant dense<-2147483648> : vector<1xi32>
    %570 = vector.multi_reduction <maxsi>, %569, %cst_146 [1, 2] : vector<1x8x16xi32> to vector<1xi32>
    %571 = vector.shape_cast %570 : vector<1xi32> to vector<1x1x1xi32>
    %572 = vector.extract %571[0, 0, 0] : i32 from vector<1x1x1xi32>
    %573 = vector.broadcast %572 : i32 to vector<8x16xi32>
    %574 = arith.cmpi eq, %8, %573 : vector<8x16xi32>
    %cst_147 = arith.constant 1.000000e+00 : f32
    %cst_148 = arith.constant 0.000000e+00 : f32
    %575 = vector.broadcast %cst_147 : f32 to vector<8x16xf32>
    %576 = vector.broadcast %cst_148 : f32 to vector<8x16xf32>
    %577 = arith.select %574, %575, %576 : vector<8x16xi1>, vector<8x16xf32>
    %cst_149 = arith.constant dense<0xFF800000> : vector<8xf32>
    %578 = vector.multi_reduction <maximumf>, %577, %cst_149 [1] : vector<8x16xf32> to vector<8xf32>
    %cst_150 = arith.constant 0.000000e+00 : f32
    %579 = vector.broadcast %cst_150 : f32 to vector<8xf32>
    %580 = arith.cmpf ogt, %578, %579 : vector<8xf32>
    %581 = vector.shape_cast %580 : vector<8xi1> to vector<8x1xi1>
    %c15_i32_151 = arith.constant 15 : i32
    %582 = arith.andi %572, %c15_i32_151 : i32
    %583 = vector.broadcast %582 : i32 to vector<8x1xi32>
    %584 = arith.cmpi eq, %10, %583 : vector<8x1xi32>
    %cst_152 = arith.constant 0.000000e+00 : f32
    %585 = vector.shape_cast %581 : vector<8x1xi1> to vector<8x1xi1>
    %586 = vector.broadcast %585 : vector<8x1xi1> to vector<8x16xi1>
    %587 = vector.broadcast %cst_152 : f32 to vector<8x16xf32>
    %588 = arith.select %586, %550, %587 : vector<8x16xi1>, vector<8x16xf32>
    %cst_153 = arith.constant 0.000000e+00 : f32
    %589 = vector.shape_cast %584 : vector<8x1xi1> to vector<8x1xi1>
    %590 = vector.broadcast %589 : vector<8x1xi1> to vector<8x16xi1>
    %591 = vector.broadcast %cst_153 : f32 to vector<8x16xf32>
    %592 = arith.select %590, %550, %591 : vector<8x16xi1>, vector<8x16xf32>
    %593 = tpu.concatenate %588, %592 in 1 : vector<8x16xf32>, vector<8x16xf32> -> vector<8x32xf32>
    %cst_154 = arith.constant dense<0.000000e+00> : vector<32xf32>
    %594 = vector.multi_reduction <add>, %593, %cst_154 [0] : vector<8x32xf32> to vector<32xf32>
    %595 = vector.shape_cast %594 : vector<32xf32> to vector<1x32xf32>
    %596 = vector.extract_strided_slice %595 {offsets = [0, 0], sizes = [1, 16], strides = [1, 1]} : vector<1x32xf32> to vector<1x16xf32>
    %597 = vector.extract_strided_slice %595 {offsets = [0, 16], sizes = [1, 16], strides = [1, 1]} : vector<1x32xf32> to vector<1x16xf32>
    %598 = vector.shape_cast %584 : vector<8x1xi1> to vector<8x1xi1>
    %599 = vector.broadcast %598 : vector<8x1xi1> to vector<8x16xi1>
    %600 = vector.shape_cast %596 : vector<1x16xf32> to vector<1x16xf32>
    %601 = vector.broadcast %600 : vector<1x16xf32> to vector<8x16xf32>
    %602 = arith.select %599, %601, %550 : vector<8x16xi1>, vector<8x16xf32>
    %603 = vector.shape_cast %581 : vector<8x1xi1> to vector<8x1xi1>
    %604 = vector.broadcast %603 : vector<8x1xi1> to vector<8x16xi1>
    %605 = vector.shape_cast %597 : vector<1x16xf32> to vector<1x16xf32>
    %606 = vector.broadcast %605 : vector<1x16xf32> to vector<8x16xf32>
    %607 = arith.select %604, %606, %602 : vector<8x16xi1>, vector<8x16xf32>
    %608 = vector.extract_strided_slice %607 {offsets = [0, 8], sizes = [8, 4], strides = [1, 1]} : vector<8x16xf32> to vector<8x4xf32>
    %609 = arith.subf %608, %3 : vector<8x4xf32>
    %610 = math.absf %609 : vector<8x4xf32>
    %611 = vector.shape_cast %610 : vector<8x4xf32> to vector<1x8x4xf32>
    %cst_155 = arith.constant dense<0.000000e+00> : vector<1xf32>
    %612 = vector.multi_reduction <add>, %611, %cst_155 [1, 2] : vector<1x8x4xf32> to vector<1xf32>
    %613 = vector.shape_cast %612 : vector<1xf32> to vector<1x1x1xf32>
    %614 = vector.extract %613[0, 0, 0] : f32 from vector<1x1x1xf32>
    %cst_156 = arith.constant 3.125000e-02 : f32
    %615 = arith.mulf %614, %cst_156 : f32
    %616 = vector.broadcast %615 : f32 to vector<1x1x128xf32>
    %c0_157 = arith.constant 0 : index
    %c0_158 = arith.constant 0 : index
    %c0_159 = arith.constant 0 : index
    %617 = vector.load %arg3[%c0_157, %c0_158, %c0_159] : memref<1x1x128xf32, #tpu.memory_space<vmem>>, vector<1x1x128xf32>
    tpu.vector_store %arg3[%c0_157, %c0_158, %c0_159], %616 {strides = array<i32>} : memref<1x1x128xf32, #tpu.memory_space<vmem>>, vector<1x1x128xf32>,
    return
  }
  func.func @transform_0(%arg0: i32) -> (i32, i32, i32) {
    %c0_i32 = arith.constant 0 : i32
    %c0_i32_0 = arith.constant 0 : i32
    %c0_i32_1 = arith.constant 0 : i32
    return %arg0, %c0_i32, %c0_i32_0 : i32, i32, i32
  }
  func.func @transform_1(%arg0: i32) -> (i32, i32, i32) {
    %c0_i32 = arith.constant 0 : i32
    %c0_i32_0 = arith.constant 0 : i32
    %c0_i32_1 = arith.constant 0 : i32
    return %arg0, %c0_i32, %c0_i32_0 : i32, i32, i32
  }
  func.func @transform_2(%arg0: i32) -> (i32, i32, i32) {
    %c0_i32 = arith.constant 0 : i32
    %c0_i32_0 = arith.constant 0 : i32
    %c0_i32_1 = arith.constant 0 : i32
    return %arg0, %c0_i32, %c0_i32_0 : i32, i32, i32
  }
}

</mosaic_0001>

<llo_original>
// kernel: tpu_custom_call.1
$region0: #{tpu_custom_call.1}
  #allocation0 [shape = 'u32[]', space=smem, size = 0x4, offset = 0x4, fixed_abs, tag = 'smem constant byte address 0x4 - core index']
  #allocation1 [shape = 'u32[144,128]{1,0:T(1,128)}', space=vmem, size = 0x12000, scoped, tag = 'internal scratch']
  %s0 = inlined_call_operand.vmem [shape: f32[4,8,4], index: 0, kind: input, shape index: {}]
  %s1 = inlined_call_operand.vmem [shape: f32[4,8,4], index: 1, kind: input, shape index: {}]
  %s2 = inlined_call_operand.hbm [shape: f32[4,1,128], index: 2, kind: output, shape index: {}]
  %s3 = sld [smem:[#allocation0]]
  $region41: #{tpu_custom_call.1} parent=0
    _
  %s5 = ssub.s32 1, %s3
  %s6 = scalar_select 0, %s5, %s3
  $region1: #{tpu_custom_call.1} parent=0
    #allocation2 [shape = 'u8[1024]{0}', space=vmem, size = 0x400, scoped, tag = 'output window, operand 0']
    #allocation3 [shape = 's32[2]{0}', space=sflag, size = 0x8, scoped, tag = 'scoped memory for tpu_custom_call.1']
    %7 = vsyncpa [#allocation3], 0
    %s8 = scalar_lea.sflag [#allocation3], 1
    %9 = vsyncpa %s8, 0
    loop: start=0, step=1, limit=6
    $region2: #{tpu_custom_call.1} parent=1 // loop_pre_header
      _
    $region3: #{tpu_custom_call.1} parent=1 // loop_header
      %s11 = sphi 0, %s15
      %p12 = scmp.ge.s32.totalorder %s11, 6
      %s21 = sphi 0, %s23
      %s24 = sphi 0, %s21
      %s25 = sphi 0, %s24
      %s41 = sphi 0, %s25
      %s47 = sphi 0, %s49
      %s50 = sphi 0, %s47
      %s51 = sphi 0, %s50
      %s67 = sphi 0, %s51
      %s73 = sphi 0, %s75
      %s76 = sphi 0, %s73
      %s77 = sphi 0, %s76
      %s93 = sphi 0, %s77
    $region4: #{tpu_custom_call.1} parent=1 // loop_header_branch
      %14 = sbr.rel (%p12) target = $region8
    $region5: #{tpu_custom_call.1} parent=1 // loop_body
      %s16 = ssub.s32 %s11, 1
      %s17 = ssub.s32 %s11, 2
      %s18 = sadd.s32 %s11, 1
      %s19 = ssub.s32 %s11, %s18
      %p20 = scmp.eq.s32.totalorder %s19, 0
      %s22 = sadd.s32 %s21, 1
      %s23 = scalar_select %p20, %s21, %s22
      %p26 = pneg %p20
      %p27 = scmp.eq.s32.totalorder %s11, 3
      %p28 = por %p26, %p27
      %p29 = scmp.ne.s32.totalorder %s21, %s24
      %p30 = scmp.eq.s32.totalorder %s11, 0
      %p31 = por %p29, %p30
      %p32 = scmp.ne.s32.totalorder %s21, %s24
      %p33 = scmp.eq.s32.totalorder %s16, 3
      %p34 = por %p32, %p33
      %p35 = scmp.ne.s32.totalorder %s24, %s25
      %p36 = scmp.eq.s32.totalorder %s16, 0
      %p37 = por %p35, %p36
      %p38 = scmp.ne.s32.totalorder %s24, %s25
      %p39 = scmp.eq.s32.totalorder %s17, 3
      %p40 = por %p38, %p39
      %p42 = scmp.ne.s32.totalorder %s25, %s41
      %p43 = scmp.eq.s32.totalorder %s17, 0
      %p44 = por %p42, %p43
      %s45 = ssub.s32 %s11, %s18
      %p46 = scmp.eq.s32.totalorder %s45, 0
      %s48 = sadd.s32 %s47, 1
      %s49 = scalar_select %p46, %s47, %s48
      %p52 = pneg %p46
      %p53 = scmp.eq.s32.totalorder %s11, 3
      %p54 = por %p52, %p53
      %p55 = scmp.ne.s32.totalorder %s47, %s50
      %p56 = scmp.eq.s32.totalorder %s11, 0
      %p57 = por %p55, %p56
      %p58 = scmp.ne.s32.totalorder %s47, %s50
      %p59 = scmp.eq.s32.totalorder %s16, 3
      %p60 = por %p58, %p59
      %p61 = scmp.ne.s32.totalorder %s50, %s51
      %p62 = scmp.eq.s32.totalorder %s16, 0
      %p63 = por %p61, %p62
      %p64 = scmp.ne.s32.totalorder %s50, %s51
      %p65 = scmp.eq.s32.totalorder %s17, 3
      %p66 = por %p64, %p65
      %p68 = scmp.ne.s32.totalorder %s51, %s67
      %p69 = scmp.eq.s32.totalorder %s17, 0
      %p70 = por %p68, %p69
      %s71 = ssub.s32 %s11, %s18
      %p72 = scmp.eq.s32.totalorder %s71, 0
      %s74 = sadd.s32 %s73, 1
      %s75 = scalar_select %p72, %s73, %s74
      %p78 = pneg %p72
      %p79 = scmp.eq.s32.totalorder %s11, 3
      %p80 = por %p78, %p79
      %p81 = scmp.ne.s32.totalorder %s73, %s76
      %p82 = scmp.eq.s32.totalorder %s11, 0
      %p83 = por %p81, %p82
      %p84 = scmp.ne.s32.totalorder %s73, %s76
      %p85 = scmp.eq.s32.totalorder %s16, 3
      %p86 = por %p84, %p85
      %p87 = scmp.ne.s32.totalorder %s76, %s77
      %p88 = scmp.eq.s32.totalorder %s16, 0
      %p89 = por %p87, %p88
      %p90 = scmp.ne.s32.totalorder %s76, %s77
      %p91 = scmp.eq.s32.totalorder %s17, 3
      %p92 = por %p90, %p91
      %p94 = scmp.ne.s32.totalorder %s77, %s93
      %p95 = scmp.eq.s32.totalorder %s17, 0
      %p96 = por %p94, %p95
      %p97 = scmp.le.s32.totalorder 1, %s11
      %p98 = scmp.lt.s32.totalorder %s11, 5
      %p99 = pnand %p97, %p98
      %p100 = pneg %p99
      // Predicated region
      $region9: #{tpu_custom_call.1} parent=5 // pred_check
        _
      $region10: #{tpu_custom_call.1} parent=5 // pred_check_branch
        %102 = sbr.rel (%p99) target = $region12
      $region11: #{tpu_custom_call.1} parent=5 // pred_region
        %s103 = ssub.s32 %s11, 1
      $region12: #{tpu_custom_call.1} parent=5 // pred_fallthru
        _
      %p104 = scmp.lt.s32.totalorder %s11, 4
      // Predicated region
      $region13: #{tpu_custom_call.1} parent=5 // pred_check
        %p105 = pneg %p104
      $region14: #{tpu_custom_call.1} parent=5 // pred_check_branch
        %107 = sbr.rel (%p105) target = $region16
      $region15: #{tpu_custom_call.1} parent=5 // pred_region
        // Predicated region
        $region17: #{tpu_custom_call.1} parent=15 // pred_check
          %p108 = pneg %p31
        $region18: #{tpu_custom_call.1} parent=15 // pred_check_branch
          %110 = sbr.rel (%p108) target = $region20
        $region19: #{tpu_custom_call.1} parent=15 // pred_region
          %p111 = scmp.lt.s32.totalorder %s11, 3
          %s112 = scalar_select %p111, %s11, 3
          %s113 = smul.addr %s112, 8
          %s114 = scalar_lea.vmem %s0, %s113
        $region20: #{tpu_custom_call.1} parent=15 // pred_fallthru
          _
        // Predicated region
        $region21: #{tpu_custom_call.1} parent=15 // pred_check
          %p115 = pneg %p57
        $region22: #{tpu_custom_call.1} parent=15 // pred_check_branch
          %117 = sbr.rel (%p115) target = $region24
        $region23: #{tpu_custom_call.1} parent=15 // pred_region
          %p118 = scmp.lt.s32.totalorder %s11, 3
          %s119 = scalar_select %p118, %s11, 3
          %s120 = smul.addr %s119, 8
          %s121 = scalar_lea.vmem %s1, %s120
        $region24: #{tpu_custom_call.1} parent=15 // pred_fallthru
          _
      $region16: #{tpu_custom_call.1} parent=5 // pred_fallthru
        _
      %p122 = scmp.le.s32.totalorder 1, %s11
      %p123 = scmp.lt.s32.totalorder %s11, 5
      %p124 = pnand %p122, %p123
      %p125 = pneg %p124
      // Predicated region
      $region25: #{tpu_custom_call.1} parent=5 // pred_check
        _
      $region26: #{tpu_custom_call.1} parent=5 // pred_check_branch
        %127 = sbr.rel (%p124) target = $region28
      $region27: #{tpu_custom_call.1} parent=5 // pred_region
        %s128 = ssub.s32 %s11, 1
        %p129 = scmp.lt.s32.totalorder %s16, 3
        %s130 = scalar_select %p129, %s16, 3
        %s131 = smul.addr %s130, 8
        %s132 = scalar_lea.vmem %s0, %s131
        %p133 = pneg %p37
        %p134 = pneg %p34
        %p135 = scmp.lt.s32.totalorder %s16, 3
        %s136 = scalar_select %p135, %s16, 3
        %s137 = smul.addr %s136, 8
        %s138 = scalar_lea.vmem %s1, %s137
        %p139 = pneg %p63
        %p140 = pneg %p60
        %p141 = pneg %p89
        %p142 = pneg %p86
        %s143 = sand.u32 %s76, 1
        %s144 = scalar_lea.sflag [#allocation3], %s143
        %s145 = sand.u32 %s76, 1
        %s146 = scalar_lea.vmem [#allocation2], %s145
        %p147 = scmp.lt.s32.totalorder %s16, 3
        %s148 = scalar_select %p147, %s16, 3
        %s149 = smul.addr %s148, 8
        %s150 = scalar_lea.vmem %s0, %s149
        %p151 = scmp.lt.s32.totalorder %s16, 3
        %s152 = scalar_select %p151, %s16, 3
        %s153 = smul.addr %s152, 8
        %s154 = scalar_lea.vmem %s1, %s153
        %v155 = vld [vmem:[%s150] sm:$0xff]
        %v156 = vld [vmem:[%s154] sm:$0xff]
        %v157 = vlaneseq
        %v158 = vshrl.u32 %v157, 7
        %v159 = vlaneseq
        %v160 = vand.u32 %v159, 127
        %v161 = vmul.u32 %v158, 16
        %v162 = vadd.s32 %v161, %v160
        %vm163 = vcmp.eq.s32.totalorder %v158, %v160
        %165 = vset.pattern.permute.xlu0 0
        %166 = vperm.xlu0 %165, %v156
        %v167 = vpop.permute.xlu0 %166
        %v169 = vsel %vm163, %v167, 0.0
        %vm170 = vcmask 130048
        %v171 = vsel %vm170, %v169, 0.0
        %v172 = vrot.slane %v171, 4
        %v173 = vadd.f32 %v171, %v172
        %v174 = vrot.slane %v173, 2
        %v175 = vadd.f32 %v173, %v174
        %v176 = vrot.slane %v175, 1
        %v177 = vadd.f32 %v175, %v176
        %178 = vset.pattern.permute.xlu0 1
        %179 = vperm.xlu0 %178, %v156
        %v180 = vpop.permute.xlu0 %179
        %v182 = vsel %vm163, %v180, 0.0
        %v183 = vsel %vm170, %v182, 0.0
        %v184 = vrot.slane %v183, 4
        %v185 = vadd.f32 %v183, %v184
        %v186 = vrot.slane %v185, 2
        %v187 = vadd.f32 %v185, %v186
        %v188 = vrot.slane %v187, 1
        %v189 = vadd.f32 %v187, %v188
        %190 = vset.pattern.permute.xlu0 2
        %191 = vperm.xlu0 %190, %v156
        %v192 = vpop.permute.xlu0 %191
        %v194 = vsel %vm163, %v192, 0.0
        %v195 = vsel %vm170, %v194, 0.0
        %v196 = vrot.slane %v195, 4
        %v197 = vadd.f32 %v195, %v196
        %v198 = vrot.slane %v197, 2
        %v199 = vadd.f32 %v197, %v198
        %v200 = vrot.slane %v199, 1
        %v201 = vadd.f32 %v199, %v200
        %202 = vset.pattern.permute.xlu0 3
        %203 = vperm.xlu0 %202, %v156
        %v204 = vpop.permute.xlu0 %203
        %v206 = vsel %vm163, %v204, 0.0
        %v207 = vsel %vm170, %v206, 0.0
        %v208 = vrot.slane %v207, 4
        %v209 = vadd.f32 %v207, %v208
        %v210 = vrot.slane %v209, 2
        %v211 = vadd.f32 %v209, %v210
        %v212 = vrot.slane %v211, 1
        %v213 = vadd.f32 %v211, %v212
        %215 = vset.pattern.permute.xlu0 2
        %216 = vperm.xlu0 %215, %v155
        %v217 = vpop.permute.xlu0 %216
        %v219 = vmin.f32 %v217, %v201
        %220 = vset.pattern.permute.xlu0 0
        %221 = vperm.xlu0 %220, %v155
        %v222 = vpop.permute.xlu0 %221
        %v224 = vmax.f32 %v222, %v177
        %v225 = vsub.f32 %v219, %v224
        %v226 = vmax.f32 %v225, 0.0
        %227 = vset.pattern.permute.xlu0 3
        %228 = vperm.xlu0 %227, %v155
        %v229 = vpop.permute.xlu0 %228
        %v231 = vmin.f32 %v229, %v213
        %232 = vset.pattern.permute.xlu0 1
        %233 = vperm.xlu0 %232, %v155
        %v234 = vpop.permute.xlu0 %233
        %v236 = vmax.f32 %v234, %v189
        %v237 = vsub.f32 %v231, %v236
        %v238 = vmax.f32 %v237, 0.0
        %v239 = vmul.f32 %v226, %v238
        %240 = vrot.lane.b32.xlu0 %v155, 2
        %v241 = vpop.permute.xlu0 %240
        %v243 = vsub.f32 %v155, %v241
        %245 = vrot.lane.b32.xlu0 %v243, 127
        %v246 = vpop.permute.xlu0 %245
        %v248 = vmul.f32 %v243, %v246
        %v249 = vsub.f32 %v201, %v177
        %v250 = vsub.f32 %v213, %v189
        %v251 = vmul.f32 %v249, %v250
        %253 = vset.pattern.permute.xlu0 2
        %254 = vperm.xlu0 %253, %v248
        %v255 = vpop.permute.xlu0 %254
        %v257 = vadd.f32 %v255, %v251
        %v258 = vsub.f32 %v257, %v239
        %vm259 = vcmp.gt.f32.partialorder %v258, 0.0
        %v260 = vrcp.pop %v258
        %v261 = vmul.f32 %v239, %v260
        %v262 = vsel %vm259, %v261, -1.0
        %vm263 = vcmp.eq.s32.totalorder %v160, 8
        %v264 = vsel %vm263, %v222, %v262
        %vm265 = vcmp.eq.s32.totalorder %v160, 9
        %v266 = vsel %vm265, %v234, %v264
        %vm267 = vcmp.eq.s32.totalorder %v160, 10
        %v268 = vsel %vm267, %v217, %v266
        %vm269 = vcmp.eq.s32.totalorder %v160, 11
        %v270 = vsel %vm269, %v229, %v268
        %vm271 = vcmp.ge.s32.totalorder %v160, 8
        %vm272 = vmxor %vm271, 1
        %v273 = vsel %vm272, 1, 0
        %vm274 = vcmp.eq.s32.totalorder %v273, 1
        %v275 = vsel %vm274, %v270, -1.0
        %v276 = vsel %vm170, %v275, -inf
        %277 = vmax.xlane.f32.xlu0 %v276
        %v278 = vpop.xlane.xlu0 %277
        %v279 = vrot.slane %v278, 4
        %v280 = vmax.f32 %v278, %v279
        %v281 = vrot.slane %v280, 2
        %v282 = vmax.f32 %v280, %v281
        %v283 = vrot.slane %v282, 1
        %v284 = vmax.f32 %v282, %v283
        %s285 = vtos %v284
        %v286 = vstv %s285
        %vm287 = vcmp.ge.f32.partialorder %v275, %v286
        %vm288 = vmand %vm274, %vm287
        %v289 = vsel %vm288, %v162, 4294967295
        %v290 = vsel %vm170, %v289, 2147483648
        %v291 = vand.u32 %v290, 65535
        %v292 = vshra.s32 %v290, 16
        %v293 = vcvt.s32.f32 %v291
        %v294 = vcvt.s32.f32 %v292
        %295 = vmax.xlane.f32.xlu0 %v294
        %v296 = vpop.xlane.xlu0 %295
        %vm297 = vcmp.eq.f32.partialorder %v294, %v296
        %v298 = vsel %vm297, %v293, -inf
        %299 = vmax.xlane.f32.xlu0 %v298
        %v300 = vpop.xlane.xlu0 %299
        %v301 = vcvt.f32.s32 %v300
        %v302 = vcvt.f32.s32 %v296
        %v303 = vshll.u32 %v302, 16
        %v304 = vadd.s32 %v303, %v301
        %v305 = vrot.slane %v304, 4
        %vm306 = vcmp.gt.s32.totalorder %v304, %v305
        %v307 = vsel %vm306, %v304, %v305
        %v308 = vrot.slane %v307, 2
        %vm309 = vcmp.gt.s32.totalorder %v307, %v308
        %v310 = vsel %vm309, %v307, %v308
        %v311 = vrot.slane %v310, 1
        %vm312 = vcmp.gt.s32.totalorder %v310, %v311
        %v313 = vsel %vm312, %v310, %v311
        %s314 = vtos %v313
        %v315 = vstv %s314
        %vm316 = vcmp.eq.s32.totalorder %v162, %v315
        %v317 = vsel %vm316, 1.0, 0.0
        %v318 = vsel %vm170, %v317, -inf
        %319 = vmax.xlane.f32.xlu0 %v318
        %v320 = vpop.xlane.xlu0 %319
        %vm321 = vcmp.gt.f32.partialorder %v320, 0.0
        %v322 = vrot.slane %v318, 4
        %v323 = vmax.f32 %v318, %v322
        %v324 = vrot.slane %v323, 2
        %v325 = vmax.f32 %v323, %v324
        %v326 = vrot.slane %v325, 1
        %v327 = vmax.f32 %v325, %v326
        %vm328 = vcmp.gt.f32.partialorder %v327, 0.0
        %s329 = sand.u32 %s314, 15
        %v330 = vstv %s329
        %vm331 = vcmp.eq.s32.totalorder %v158, %v330
        %v332 = vsel %vm321, 1, 0
        %vm333 = vcmp.eq.s32.totalorder %v332, 1
        %v334 = vsel %vm333, %v270, 0.0
        %v335 = vsel %vm331, 1, 0
        %vm336 = vcmp.eq.s32.totalorder %v335, 1
        %v337 = vsel %vm336, %v270, 0.0
        %339 = vrot.lane.b32.xlu0 %v337, 16
        %v340 = vpop.permute.xlu0 %339
        %v342 = vsel %vm170, %v334, %v340
        %vm343 = vcmask 261120
        %v344 = vsel %vm343, %v342, 0.0
        %v345 = vrot.slane %v344, 4
        %v346 = vadd.f32 %v344, %v345
        %v347 = vrot.slane %v346, 2
        %v348 = vadd.f32 %v346, %v347
        %v349 = vrot.slane %v348, 1
        %v350 = vadd.f32 %v348, %v349
        %v351 = vsel %vm336, %v350, %v270
        %353 = vrot.lane.b32.xlu0 %v351, 16
        %v354 = vpop.permute.xlu0 %353
        %v356 = vsel %vm333, %v350, %v354
        %vm357 = vmor %vm271, %vm328
        %vm358 = vmxor %vm331, 1
        %vm359 = vmxor %vm357, 1
        %v360 = vsel %vm358, 1, 0
        %vm361 = vcmp.eq.s32.totalorder %v360, 1
        %v362 = vsel %vm359, 1, 0
        %vm363 = vcmp.eq.s32.totalorder %v362, 1
        %vm364 = vmand %vm361, %vm363
        %366 = vrot.lane.b32.xlu0 %v356, 112
        %v367 = vpop.permute.xlu0 %366
        %v369 = vsel %vm364, %v367, -1.0
        %v370 = vsel %vm170, %v369, -inf
        %371 = vmax.xlane.f32.xlu0 %v370
        %v372 = vpop.xlane.xlu0 %371
        %v373 = vrot.slane %v372, 4
        %v374 = vmax.f32 %v372, %v373
        %v375 = vrot.slane %v374, 2
        %v376 = vmax.f32 %v374, %v375
        %v377 = vrot.slane %v376, 1
        %v378 = vmax.f32 %v376, %v377
        %s379 = vtos %v378
        %v380 = vstv %s379
        %vm381 = vcmp.ge.f32.partialorder %v369, %v380
        %vm382 = vmand %vm364, %vm381
        %v383 = vsel %vm382, %v162, 4294967295
        %v384 = vsel %vm170, %v383, 2147483648
        %v385 = vand.u32 %v384, 65535
        %v386 = vshra.s32 %v384, 16
        %v387 = vcvt.s32.f32 %v385
        %v388 = vcvt.s32.f32 %v386
        %389 = vmax.xlane.f32.xlu0 %v388
        %v390 = vpop.xlane.xlu0 %389
        %vm391 = vcmp.eq.f32.partialorder %v388, %v390
        %v392 = vsel %vm391, %v387, -inf
        %393 = vmax.xlane.f32.xlu0 %v392
        %v394 = vpop.xlane.xlu0 %393
        %v395 = vcvt.f32.s32 %v394
        %v396 = vcvt.f32.s32 %v390
        %v397 = vshll.u32 %v396, 16
        %v398 = vadd.s32 %v397, %v395
        %v399 = vrot.slane %v398, 4
        %vm400 = vcmp.gt.s32.totalorder %v398, %v399
        %v401 = vsel %vm400, %v398, %v399
        %v402 = vrot.slane %v401, 2
        %vm403 = vcmp.gt.s32.totalorder %v401, %v402
        %v404 = vsel %vm403, %v401, %v402
        %v405 = vrot.slane %v404, 1
        %vm406 = vcmp.gt.s32.totalorder %v404, %v405
        %v407 = vsel %vm406, %v404, %v405
        %s408 = vtos %v407
        %v409 = vstv %s408
        %vm410 = vcmp.eq.s32.totalorder %v162, %v409
        %v411 = vsel %vm410, 1.0, 0.0
        %v412 = vsel %vm170, %v411, -inf
        %413 = vmax.xlane.f32.xlu0 %v412
        %v414 = vpop.xlane.xlu0 %413
        %vm415 = vcmp.gt.f32.partialorder %v414, 0.0
        %v416 = vrot.slane %v412, 4
        %v417 = vmax.f32 %v412, %v416
        %v418 = vrot.slane %v417, 2
        %v419 = vmax.f32 %v417, %v418
        %v420 = vrot.slane %v419, 1
        %v421 = vmax.f32 %v419, %v420
        %vm422 = vcmp.gt.f32.partialorder %v421, 0.0
        %s423 = sand.u32 %s408, 15
        %v424 = vstv %s423
        %vm425 = vcmp.eq.s32.totalorder %v158, %v424
        %v426 = vsel %vm415, 1, 0
        %vm427 = vcmp.eq.s32.totalorder %v426, 1
        %v428 = vsel %vm427, %v356, 0.0
        %v429 = vsel %vm425, 1, 0
        %vm430 = vcmp.eq.s32.totalorder %v429, 1
        %v431 = vsel %vm430, %v356, 0.0
        %433 = vrot.lane.b32.xlu0 %v428, 112
        %v434 = vpop.permute.xlu0 %433
        %v436 = vsel %vm170, %v434, %v431
        %v437 = vsel %vm343, %v436, 0.0
        %v438 = vrot.slane %v437, 4
        %v439 = vadd.f32 %v437, %v438
        %v440 = vrot.slane %v439, 2
        %v441 = vadd.f32 %v439, %v440
        %v442 = vrot.slane %v441, 1
        %v443 = vadd.f32 %v441, %v442
        %v444 = vsel %vm430, %v443, %v367
        %446 = vrot.lane.b32.xlu0 %v444, 16
        %v447 = vpop.permute.xlu0 %446
        %v449 = vsel %vm427, %v443, %v447
        %vm450 = vmor %vm331, %vm425
        %vm451 = vmor %vm357, %vm422
        %vm452 = vmxor %vm450, 1
        %vm453 = vmxor %vm451, 1
        %v454 = vsel %vm452, 1, 0
        %vm455 = vcmp.eq.s32.totalorder %v454, 1
        %v456 = vsel %vm453, 1, 0
        %vm457 = vcmp.eq.s32.totalorder %v456, 1
        %vm458 = vmand %vm455, %vm457
        %460 = vrot.lane.b32.xlu0 %v449, 112
        %v461 = vpop.permute.xlu0 %460
        %v463 = vsel %vm458, %v461, -1.0
        %v464 = vsel %vm170, %v463, -inf
        %465 = vmax.xlane.f32.xlu0 %v464
        %v466 = vpop.xlane.xlu0 %465
        %v467 = vrot.slane %v466, 4
        %v468 = vmax.f32 %v466, %v467
        %v469 = vrot.slane %v468, 2
        %v470 = vmax.f32 %v468, %v469
        %v471 = vrot.slane %v470, 1
        %v472 = vmax.f32 %v470, %v471
        %s473 = vtos %v472
        %v474 = vstv %s473
        %vm475 = vcmp.ge.f32.partialorder %v463, %v474
        %vm476 = vmand %vm458, %vm475
        %v477 = vsel %vm476, %v162, 4294967295
        %v478 = vsel %vm170, %v477, 2147483648
        %v479 = vand.u32 %v478, 65535
        %v480 = vshra.s32 %v478, 16
        %v481 = vcvt.s32.f32 %v479
        %v482 = vcvt.s32.f32 %v480
        %483 = vmax.xlane.f32.xlu0 %v482
        %v484 = vpop.xlane.xlu0 %483
        %vm485 = vcmp.eq.f32.partialorder %v482, %v484
        %v486 = vsel %vm485, %v481, -inf
        %487 = vmax.xlane.f32.xlu0 %v486
        %v488 = vpop.xlane.xlu0 %487
        %v489 = vcvt.f32.s32 %v488
        %v490 = vcvt.f32.s32 %v484
        %v491 = vshll.u32 %v490, 16
        %v492 = vadd.s32 %v491, %v489
        %v493 = vrot.slane %v492, 4
        %vm494 = vcmp.gt.s32.totalorder %v492, %v493
        %v495 = vsel %vm494, %v492, %v493
        %v496 = vrot.slane %v495, 2
        %vm497 = vcmp.gt.s32.totalorder %v495, %v496
        %v498 = vsel %vm497, %v495, %v496
        %v499 = vrot.slane %v498, 1
        %vm500 = vcmp.gt.s32.totalorder %v498, %v499
        %v501 = vsel %vm500, %v498, %v499
        %s502 = vtos %v501
        %v503 = vstv %s502
        %vm504 = vcmp.eq.s32.totalorder %v162, %v503
        %v505 = vsel %vm504, 1.0, 0.0
        %v506 = vsel %vm170, %v505, -inf
        %507 = vmax.xlane.f32.xlu0 %v506
        %v508 = vpop.xlane.xlu0 %507
        %vm509 = vcmp.gt.f32.partialorder %v508, 0.0
        %v510 = vrot.slane %v506, 4
        %v511 = vmax.f32 %v506, %v510
        %v512 = vrot.slane %v511, 2
        %v513 = vmax.f32 %v511, %v512
        %v514 = vrot.slane %v513, 1
        %v515 = vmax.f32 %v513, %v514
        %vm516 = vcmp.gt.f32.partialorder %v515, 0.0
        %s517 = sand.u32 %s502, 15
        %v518 = vstv %s517
        %vm519 = vcmp.eq.s32.totalorder %v158, %v518
        %v520 = vsel %vm509, 1, 0
        %vm521 = vcmp.eq.s32.totalorder %v520, 1
        %v522 = vsel %vm521, %v449, 0.0
        %v523 = vsel %vm519, 1, 0
        %vm524 = vcmp.eq.s32.totalorder %v523, 1
        %v525 = vsel %vm524, %v449, 0.0
        %527 = vrot.lane.b32.xlu0 %v522, 112
        %v528 = vpop.permute.xlu0 %527
        %v530 = vsel %vm170, %v528, %v525
        %v531 = vsel %vm343, %v530, 0.0
        %v532 = vrot.slane %v531, 4
        %v533 = vadd.f32 %v531, %v532
        %v534 = vrot.slane %v533, 2
        %v535 = vadd.f32 %v533, %v534
        %v536 = vrot.slane %v535, 1
        %v537 = vadd.f32 %v535, %v536
        %v538 = vsel %vm524, %v537, %v461
        %540 = vrot.lane.b32.xlu0 %v538, 16
        %v541 = vpop.permute.xlu0 %540
        %v543 = vsel %vm521, %v537, %v541
        %vm544 = vmor %vm450, %vm519
        %vm545 = vmor %vm451, %vm516
        %vm546 = vmxor %vm544, 1
        %vm547 = vmxor %vm545, 1
        %v548 = vsel %vm546, 1, 0
        %vm549 = vcmp.eq.s32.totalorder %v548, 1
        %v550 = vsel %vm547, 1, 0
        %vm551 = vcmp.eq.s32.totalorder %v550, 1
        %vm552 = vmand %vm549, %vm551
        %554 = vrot.lane.b32.xlu0 %v543, 112
        %v555 = vpop.permute.xlu0 %554
        %v557 = vsel %vm552, %v555, -1.0
        %v558 = vsel %vm170, %v557, -inf
        %559 = vmax.xlane.f32.xlu0 %v558
        %v560 = vpop.xlane.xlu0 %559
        %v561 = vrot.slane %v560, 4
        %v562 = vmax.f32 %v560, %v561
        %v563 = vrot.slane %v562, 2
        %v564 = vmax.f32 %v562, %v563
        %v565 = vrot.slane %v564, 1
        %v566 = vmax.f32 %v564, %v565
        %s567 = vtos %v566
        %v568 = vstv %s567
        %vm569 = vcmp.ge.f32.partialorder %v557, %v568
        %vm570 = vmand %vm552, %vm569
        %v571 = vsel %vm570, %v162, 4294967295
        %v572 = vsel %vm170, %v571, 2147483648
        %v573 = vand.u32 %v572, 65535
        %v574 = vshra.s32 %v572, 16
        %v575 = vcvt.s32.f32 %v573
        %v576 = vcvt.s32.f32 %v574
        %577 = vmax.xlane.f32.xlu0 %v576
        %v578 = vpop.xlane.xlu0 %577
        %vm579 = vcmp.eq.f32.partialorder %v576, %v578
        %v580 = vsel %vm579, %v575, -inf
        %581 = vmax.xlane.f32.xlu0 %v580
        %v582 = vpop.xlane.xlu0 %581
        %v583 = vcvt.f32.s32 %v582
        %v584 = vcvt.f32.s32 %v578
        %v585 = vshll.u32 %v584, 16
        %v586 = vadd.s32 %v585, %v583
        %v587 = vrot.slane %v586, 4
        %vm588 = vcmp.gt.s32.totalorder %v586, %v587
        %v589 = vsel %vm588, %v586, %v587
        %v590 = vrot.slane %v589, 2
        %vm591 = vcmp.gt.s32.totalorder %v589, %v590
        %v592 = vsel %vm591, %v589, %v590
        %v593 = vrot.slane %v592, 1
        %vm594 = vcmp.gt.s32.totalorder %v592, %v593
        %v595 = vsel %vm594, %v592, %v593
        %s596 = vtos %v595
        %v597 = vstv %s596
        %vm598 = vcmp.eq.s32.totalorder %v162, %v597
        %v599 = vsel %vm598, 1.0, 0.0
        %v600 = vsel %vm170, %v599, -inf
        %601 = vmax.xlane.f32.xlu0 %v600
        %v602 = vpop.xlane.xlu0 %601
        %vm603 = vcmp.gt.f32.partialorder %v602, 0.0
        %v604 = vrot.slane %v600, 4
        %v605 = vmax.f32 %v600, %v604
        %v606 = vrot.slane %v605, 2
        %v607 = vmax.f32 %v605, %v606
        %v608 = vrot.slane %v607, 1
        %v609 = vmax.f32 %v607, %v608
        %vm610 = vcmp.gt.f32.partialorder %v609, 0.0
        %s611 = sand.u32 %s596, 15
        %v612 = vstv %s611
        %vm613 = vcmp.eq.s32.totalorder %v158, %v612
        %v614 = vsel %vm603, 1, 0
        %vm615 = vcmp.eq.s32.totalorder %v614, 1
        %v616 = vsel %vm615, %v543, 0.0
        %v617 = vsel %vm613, 1, 0
        %vm618 = vcmp.eq.s32.totalorder %v617, 1
        %v619 = vsel %vm618, %v543, 0.0
        %621 = vrot.lane.b32.xlu0 %v616, 112
        %v622 = vpop.permute.xlu0 %621
        %v624 = vsel %vm170, %v622, %v619
        %v625 = vsel %vm343, %v624, 0.0
        %v626 = vrot.slane %v625, 4
        %v627 = vadd.f32 %v625, %v626
        %v628 = vrot.slane %v627, 2
        %v629 = vadd.f32 %v627, %v628
        %v630 = vrot.slane %v629, 1
        %v631 = vadd.f32 %v629, %v630
        %v632 = vsel %vm618, %v631, %v555
        %634 = vrot.lane.b32.xlu0 %v632, 16
        %v635 = vpop.permute.xlu0 %634
        %v637 = vsel %vm615, %v631, %v635
        %vm638 = vmor %vm544, %vm613
        %vm639 = vmor %vm545, %vm610
        %vm640 = vmxor %vm638, 1
        %vm641 = vmxor %vm639, 1
        %v642 = vsel %vm640, 1, 0
        %vm643 = vcmp.eq.s32.totalorder %v642, 1
        %v644 = vsel %vm641, 1, 0
        %vm645 = vcmp.eq.s32.totalorder %v644, 1
        %vm646 = vmand %vm643, %vm645
        %648 = vrot.lane.b32.xlu0 %v637, 112
        %v649 = vpop.permute.xlu0 %648
        %v651 = vsel %vm646, %v649, -1.0
        %v652 = vsel %vm170, %v651, -inf
        %653 = vmax.xlane.f32.xlu0 %v652
        %v654 = vpop.xlane.xlu0 %653
        %v655 = vrot.slane %v654, 4
        %v656 = vmax.f32 %v654, %v655
        %v657 = vrot.slane %v656, 2
        %v658 = vmax.f32 %v656, %v657
        %v659 = vrot.slane %v658, 1
        %v660 = vmax.f32 %v658, %v659
        %s661 = vtos %v660
        %v662 = vstv %s661
        %vm663 = vcmp.ge.f32.partialorder %v651, %v662
        %vm664 = vmand %vm646, %vm663
        %v665 = vsel %vm664, %v162, 4294967295
        %v666 = vsel %vm170, %v665, 2147483648
        %v667 = vand.u32 %v666, 65535
        %v668 = vshra.s32 %v666, 16
        %v669 = vcvt.s32.f32 %v667
        %v670 = vcvt.s32.f32 %v668
        %671 = vmax.xlane.f32.xlu0 %v670
        %v672 = vpop.xlane.xlu0 %671
        %vm673 = vcmp.eq.f32.partialorder %v670, %v672
        %v674 = vsel %vm673, %v669, -inf
        %675 = vmax.xlane.f32.xlu0 %v674
        %v676 = vpop.xlane.xlu0 %675
        %v677 = vcvt.f32.s32 %v676
        %v678 = vcvt.f32.s32 %v672
        %v679 = vshll.u32 %v678, 16
        %v680 = vadd.s32 %v679, %v677
        %v681 = vrot.slane %v680, 4
        %vm682 = vcmp.gt.s32.totalorder %v680, %v681
        %v683 = vsel %vm682, %v680, %v681
        %v684 = vrot.slane %v683, 2
        %vm685 = vcmp.gt.s32.totalorder %v683, %v684
        %v686 = vsel %vm685, %v683, %v684
        %v687 = vrot.slane %v686, 1
        %vm688 = vcmp.gt.s32.totalorder %v686, %v687
        %v689 = vsel %vm688, %v686, %v687
        %s690 = vtos %v689
        %v691 = vstv %s690
        %vm692 = vcmp.eq.s32.totalorder %v162, %v691
        %v693 = vsel %vm692, 1.0, 0.0
        %v694 = vsel %vm170, %v693, -inf
        %695 = vmax.xlane.f32.xlu0 %v694
        %v696 = vpop.xlane.xlu0 %695
        %vm697 = vcmp.gt.f32.partialorder %v696, 0.0
        %v698 = vrot.slane %v694, 4
        %v699 = vmax.f32 %v694, %v698
        %v700 = vrot.slane %v699, 2
        %v701 = vmax.f32 %v699, %v700
        %v702 = vrot.slane %v701, 1
        %v703 = vmax.f32 %v701, %v702
        %vm704 = vcmp.gt.f32.partialorder %v703, 0.0
        %s705 = sand.u32 %s690, 15
        %v706 = vstv %s705
        %vm707 = vcmp.eq.s32.totalorder %v158, %v706
        %v708 = vsel %vm697, 1, 0
        %vm709 = vcmp.eq.s32.totalorder %v708, 1
        %v710 = vsel %vm709, %v637, 0.0
        %v711 = vsel %vm707, 1, 0
        %vm712 = vcmp.eq.s32.totalorder %v711, 1
        %v713 = vsel %vm712, %v637, 0.0
        %715 = vrot.lane.b32.xlu0 %v710, 112
        %v716 = vpop.permute.xlu0 %715
        %v718 = vsel %vm170, %v716, %v713
        %v719 = vsel %vm343, %v718, 0.0
        %v720 = vrot.slane %v719, 4
        %v721 = vadd.f32 %v719, %v720
        %v722 = vrot.slane %v721, 2
        %v723 = vadd.f32 %v721, %v722
        %v724 = vrot.slane %v723, 1
        %v725 = vadd.f32 %v723, %v724
        %v726 = vsel %vm712, %v725, %v649
        %728 = vrot.lane.b32.xlu0 %v726, 16
        %v729 = vpop.permute.xlu0 %728
        %v731 = vsel %vm709, %v725, %v729
        %vm732 = vmor %vm638, %vm707
        %vm733 = vmor %vm639, %vm704
        %vm734 = vmxor %vm732, 1
        %vm735 = vmxor %vm733, 1
        %v736 = vsel %vm734, 1, 0
        %vm737 = vcmp.eq.s32.totalorder %v736, 1
        %v738 = vsel %vm735, 1, 0
        %vm739 = vcmp.eq.s32.totalorder %v738, 1
        %vm740 = vmand %vm737, %vm739
        %742 = vrot.lane.b32.xlu0 %v731, 112
        %v743 = vpop.permute.xlu0 %742
        %v745 = vsel %vm740, %v743, -1.0
        %v746 = vsel %vm170, %v745, -inf
        %747 = vmax.xlane.f32.xlu0 %v746
        %v748 = vpop.xlane.xlu0 %747
        %v749 = vrot.slane %v748, 4
        %v750 = vmax.f32 %v748, %v749
        %v751 = vrot.slane %v750, 2
        %v752 = vmax.f32 %v750, %v751
        %v753 = vrot.slane %v752, 1
        %v754 = vmax.f32 %v752, %v753
        %s755 = vtos %v754
        %v756 = vstv %s755
        %vm757 = vcmp.ge.f32.partialorder %v745, %v756
        %vm758 = vmand %vm740, %vm757
        %v759 = vsel %vm758, %v162, 4294967295
        %v760 = vsel %vm170, %v759, 2147483648
        %v761 = vand.u32 %v760, 65535
        %v762 = vshra.s32 %v760, 16
        %v763 = vcvt.s32.f32 %v761
        %v764 = vcvt.s32.f32 %v762
        %765 = vmax.xlane.f32.xlu0 %v764
        %v766 = vpop.xlane.xlu0 %765
        %vm767 = vcmp.eq.f32.partialorder %v764, %v766
        %v768 = vsel %vm767, %v763, -inf
        %769 = vmax.xlane.f32.xlu0 %v768
        %v770 = vpop.xlane.xlu0 %769
        %v771 = vcvt.f32.s32 %v770
        %v772 = vcvt.f32.s32 %v766
        %v773 = vshll.u32 %v772, 16
        %v774 = vadd.s32 %v773, %v771
        %v775 = vrot.slane %v774, 4
        %vm776 = vcmp.gt.s32.totalorder %v774, %v775
        %v777 = vsel %vm776, %v774, %v775
        %v778 = vrot.slane %v777, 2
        %vm779 = vcmp.gt.s32.totalorder %v777, %v778
        %v780 = vsel %vm779, %v777, %v778
        %v781 = vrot.slane %v780, 1
        %vm782 = vcmp.gt.s32.totalorder %v780, %v781
        %v783 = vsel %vm782, %v780, %v781
        %s784 = vtos %v783
        %v785 = vstv %s784
        %vm786 = vcmp.eq.s32.totalorder %v162, %v785
        %v787 = vsel %vm786, 1.0, 0.0
        %v788 = vsel %vm170, %v787, -inf
        %789 = vmax.xlane.f32.xlu0 %v788
        %v790 = vpop.xlane.xlu0 %789
        %vm791 = vcmp.gt.f32.partialorder %v790, 0.0
        %v792 = vrot.slane %v788, 4
        %v793 = vmax.f32 %v788, %v792
        %v794 = vrot.slane %v793, 2
        %v795 = vmax.f32 %v793, %v794
        %v796 = vrot.slane %v795, 1
        %v797 = vmax.f32 %v795, %v796
        %vm798 = vcmp.gt.f32.partialorder %v797, 0.0
        %s799 = sand.u32 %s784, 15
        %v800 = vstv %s799
        %vm801 = vcmp.eq.s32.totalorder %v158, %v800
        %v802 = vsel %vm791, 1, 0
        %vm803 = vcmp.eq.s32.totalorder %v802, 1
        %v804 = vsel %vm803, %v731, 0.0
        %v805 = vsel %vm801, 1, 0
        %vm806 = vcmp.eq.s32.totalorder %v805, 1
        %v807 = vsel %vm806, %v731, 0.0
        %809 = vrot.lane.b32.xlu0 %v804, 112
        %v810 = vpop.permute.xlu0 %809
        %v812 = vsel %vm170, %v810, %v807
        %v813 = vsel %vm343, %v812, 0.0
        %v814 = vrot.slane %v813, 4
        %v815 = vadd.f32 %v813, %v814
        %v816 = vrot.slane %v815, 2
        %v817 = vadd.f32 %v815, %v816
        %v818 = vrot.slane %v817, 1
        %v819 = vadd.f32 %v817, %v818
        %v820 = vsel %vm806, %v819, %v743
        %822 = vrot.lane.b32.xlu0 %v820, 16
        %v823 = vpop.permute.xlu0 %822
        %v825 = vsel %vm803, %v819, %v823
        %vm826 = vmor %vm732, %vm801
        %vm827 = vmor %vm733, %vm798
        %vm828 = vmxor %vm826, 1
        %vm829 = vmxor %vm827, 1
        %v830 = vsel %vm828, 1, 0
        %vm831 = vcmp.eq.s32.totalorder %v830, 1
        %v832 = vsel %vm829, 1, 0
        %vm833 = vcmp.eq.s32.totalorder %v832, 1
        %vm834 = vmand %vm831, %vm833
        %836 = vrot.lane.b32.xlu0 %v825, 112
        %v837 = vpop.permute.xlu0 %836
        %v839 = vsel %vm834, %v837, -1.0
        %v840 = vsel %vm170, %v839, -inf
        %841 = vmax.xlane.f32.xlu0 %v840
        %v842 = vpop.xlane.xlu0 %841
        %v843 = vrot.slane %v842, 4
        %v844 = vmax.f32 %v842, %v843
        %v845 = vrot.slane %v844, 2
        %v846 = vmax.f32 %v844, %v845
        %v847 = vrot.slane %v846, 1
        %v848 = vmax.f32 %v846, %v847
        %s849 = vtos %v848
        %v850 = vstv %s849
        %vm851 = vcmp.ge.f32.partialorder %v839, %v850
        %vm852 = vmand %vm834, %vm851
        %v853 = vsel %vm852, %v162, 4294967295
        %v854 = vsel %vm170, %v853, 2147483648
        %v855 = vand.u32 %v854, 65535
        %v856 = vshra.s32 %v854, 16
        %v857 = vcvt.s32.f32 %v855
        %v858 = vcvt.s32.f32 %v856
        %859 = vmax.xlane.f32.xlu0 %v858
        %v860 = vpop.xlane.xlu0 %859
        %vm861 = vcmp.eq.f32.partialorder %v858, %v860
        %v862 = vsel %vm861, %v857, -inf
        %863 = vmax.xlane.f32.xlu0 %v862
        %v864 = vpop.xlane.xlu0 %863
        %v865 = vcvt.f32.s32 %v864
        %v866 = vcvt.f32.s32 %v860
        %v867 = vshll.u32 %v866, 16
        %v868 = vadd.s32 %v867, %v865
        %v869 = vrot.slane %v868, 4
        %vm870 = vcmp.gt.s32.totalorder %v868, %v869
        %v871 = vsel %vm870, %v868, %v869
        %v872 = vrot.slane %v871, 2
        %vm873 = vcmp.gt.s32.totalorder %v871, %v872
        %v874 = vsel %vm873, %v871, %v872
        %v875 = vrot.slane %v874, 1
        %vm876 = vcmp.gt.s32.totalorder %v874, %v875
        %v877 = vsel %vm876, %v874, %v875
        %s878 = vtos %v877
        %v879 = vstv %s878
        %vm880 = vcmp.eq.s32.totalorder %v162, %v879
        %v881 = vsel %vm880, 1.0, 0.0
        %v882 = vsel %vm170, %v881, -inf
        %883 = vmax.xlane.f32.xlu0 %v882
        %v884 = vpop.xlane.xlu0 %883
        %vm885 = vcmp.gt.f32.partialorder %v884, 0.0
        %v886 = vrot.slane %v882, 4
        %v887 = vmax.f32 %v882, %v886
        %v888 = vrot.slane %v887, 2
        %v889 = vmax.f32 %v887, %v888
        %v890 = vrot.slane %v889, 1
        %v891 = vmax.f32 %v889, %v890
        %vm892 = vcmp.gt.f32.partialorder %v891, 0.0
        %s893 = sand.u32 %s878, 15
        %v894 = vstv %s893
        %vm895 = vcmp.eq.s32.totalorder %v158, %v894
        %v896 = vsel %vm885, 1, 0
        %vm897 = vcmp.eq.s32.totalorder %v896, 1
        %v898 = vsel %vm897, %v825, 0.0
        %v899 = vsel %vm895, 1, 0
        %vm900 = vcmp.eq.s32.totalorder %v899, 1
        %v901 = vsel %vm900, %v825, 0.0
        %903 = vrot.lane.b32.xlu0 %v898, 112
        %v904 = vpop.permute.xlu0 %903
        %v906 = vsel %vm170, %v904, %v901
        %v907 = vsel %vm343, %v906, 0.0
        %v908 = vrot.slane %v907, 4
        %v909 = vadd.f32 %v907, %v908
        %v910 = vrot.slane %v909, 2
        %v911 = vadd.f32 %v909, %v910
        %v912 = vrot.slane %v911, 1
        %v913 = vadd.f32 %v911, %v912
        %v914 = vsel %vm900, %v913, %v837
        %916 = vrot.lane.b32.xlu0 %v914, 16
        %v917 = vpop.permute.xlu0 %916
        %v919 = vsel %vm897, %v913, %v917
        %vm920 = vmor %vm826, %vm895
        %vm921 = vmor %vm827, %vm892
        %vm922 = vmxor %vm920, 1
        %vm923 = vmxor %vm921, 1
        %v924 = vsel %vm922, 1, 0
        %vm925 = vcmp.eq.s32.totalorder %v924, 1
        %v926 = vsel %vm923, 1, 0
        %vm927 = vcmp.eq.s32.totalorder %v926, 1
        %vm928 = vmand %vm925, %vm927
        %930 = vrot.lane.b32.xlu0 %v919, 112
        %v931 = vpop.permute.xlu0 %930
        %v933 = vsel %vm928, %v931, -1.0
        %v934 = vsel %vm170, %v933, -inf
        %935 = vmax.xlane.f32.xlu0 %v934
        %v936 = vpop.xlane.xlu0 %935
        %v937 = vrot.slane %v936, 4
        %v938 = vmax.f32 %v936, %v937
        %v939 = vrot.slane %v938, 2
        %v940 = vmax.f32 %v938, %v939
        %v941 = vrot.slane %v940, 1
        %v942 = vmax.f32 %v940, %v941
        %s943 = vtos %v942
        %v944 = vstv %s943
        %vm945 = vcmp.ge.f32.partialorder %v933, %v944
        %vm946 = vmand %vm928, %vm945
        %v947 = vsel %vm946, %v162, 4294967295
        %v948 = vsel %vm170, %v947, 2147483648
        %v949 = vand.u32 %v948, 65535
        %v950 = vshra.s32 %v948, 16
        %v951 = vcvt.s32.f32 %v949
        %v952 = vcvt.s32.f32 %v950
        %953 = vmax.xlane.f32.xlu0 %v952
        %v954 = vpop.xlane.xlu0 %953
        %vm955 = vcmp.eq.f32.partialorder %v952, %v954
        %v956 = vsel %vm955, %v951, -inf
        %957 = vmax.xlane.f32.xlu0 %v956
        %v958 = vpop.xlane.xlu0 %957
        %v959 = vcvt.f32.s32 %v958
        %v960 = vcvt.f32.s32 %v954
        %v961 = vshll.u32 %v960, 16
        %v962 = vadd.s32 %v961, %v959
        %v963 = vrot.slane %v962, 4
        %vm964 = vcmp.gt.s32.totalorder %v962, %v963
        %v965 = vsel %vm964, %v962, %v963
        %v966 = vrot.slane %v965, 2
        %vm967 = vcmp.gt.s32.totalorder %v965, %v966
        %v968 = vsel %vm967, %v965, %v966
        %v969 = vrot.slane %v968, 1
        %vm970 = vcmp.gt.s32.totalorder %v968, %v969
        %v971 = vsel %vm970, %v968, %v969
        %s972 = vtos %v971
        %v973 = vstv %s972
        %vm974 = vcmp.eq.s32.totalorder %v162, %v973
        %v975 = vsel %vm974, 1.0, 0.0
        %v976 = vsel %vm170, %v975, -inf
        %977 = vmax.xlane.f32.xlu0 %v976
        %v978 = vpop.xlane.xlu0 %977
        %vm979 = vcmp.gt.f32.partialorder %v978, 0.0
        %s980 = sand.u32 %s972, 15
        %v981 = vstv %s980
        %vm982 = vcmp.eq.s32.totalorder %v158, %v981
        %v983 = vsel %vm979, 1, 0
        %vm984 = vcmp.eq.s32.totalorder %v983, 1
        %v985 = vsel %vm984, %v919, 0.0
        %v986 = vsel %vm982, 1, 0
        %vm987 = vcmp.eq.s32.totalorder %v986, 1
        %v988 = vsel %vm987, %v919, 0.0
        %990 = vrot.lane.b32.xlu0 %v985, 112
        %v991 = vpop.permute.xlu0 %990
        %v993 = vsel %vm170, %v991, %v988
        %v994 = vsel %vm343, %v993, 0.0
        %v995 = vrot.slane %v994, 4
        %v996 = vadd.f32 %v994, %v995
        %v997 = vrot.slane %v996, 2
        %v998 = vadd.f32 %v996, %v997
        %v999 = vrot.slane %v998, 1
        %v1000 = vadd.f32 %v998, %v999
        %v1001 = vsel %vm987, %v1000, %v931
        %1003 = vrot.lane.b32.xlu0 %v1001, 16
        %v1004 = vpop.permute.xlu0 %1003
        %v1006 = vsel %vm984, %v1000, %v1004
        %1007 = vrot.lane.b32.xlu0 %v156, 24
        %v1008 = vpop.permute.xlu0 %1007
        %v1010 = vsub.f32 %v1006, %v1008
        %v1011 = vand.u32 2147483647, %v1010
        %1013 = vrot.lane.b32.xlu0 %v1011, 104
        %v1014 = vpop.permute.xlu0 %1013
        %vm1016 = vcmask 31744
        %v1017 = vsel %vm1016, %v1014, 0.0
        %1018 = vadd.xlane.f32.xlu0 %v1017
        %v1019 = vpop.xlane.xlu0 %1018
        %v1020 = vrot.slane %v1019, 4
        %v1021 = vadd.f32 %v1019, %v1020
        %v1022 = vrot.slane %v1021, 2
        %v1023 = vadd.f32 %v1021, %v1022
        %v1024 = vrot.slane %v1023, 1
        %v1025 = vadd.f32 %v1023, %v1024
        %s1026 = vtos %v1025
        %s1027 = smul.f32 %s1026, 0.03125
        %v1028 = vstv %s1027
        %1029 = vst [vmem:[%s146] sm:$0x1] %v1028
        %s1030 = sand.u32 %s76, 1
        %s1031 = scalar_lea.sflag [#allocation3], %s1030
        %s1032 = sand.u32 %s76, 1
        %s1033 = scalar_lea.vmem [#allocation2], %s1032
        // Predicated region
        $region29: #{tpu_custom_call.1} parent=27 // pred_check
          %p1034 = pneg %p86
        $region30: #{tpu_custom_call.1} parent=27 // pred_check_branch
          %1036 = sbr.rel (%p1034) target = $region32
        $region31: #{tpu_custom_call.1} parent=27 // pred_region
          %s1038 = ssub.s32 16, 16
          %1039 = vsyncadd %s1031, %s1038
          %s1040 = smul.addr %s16, 16
          %s1041 = scalar_lea.hbm %s2, %s1040
          %s1043 = sshll.u32 %s1033, 4
          %s1044 = int_to_ptr.vmem [resolvable:$true] %s1043
          %1046 = dma.vmem_to_hbm [thread:$0]  %s1044, 16, %s1041, %s1031
        $region32: #{tpu_custom_call.1} parent=27 // pred_fallthru
          _
      $region28: #{tpu_custom_call.1} parent=5 // pred_fallthru
        _
      %p1047 = scmp.le.s32.totalorder 2, %s11
      // Predicated region
      $region33: #{tpu_custom_call.1} parent=5 // pred_check
        %p1048 = pneg %p1047
      $region34: #{tpu_custom_call.1} parent=5 // pred_check_branch
        %1050 = sbr.rel (%p1048) target = $region36
      $region35: #{tpu_custom_call.1} parent=5 // pred_region
        %s1051 = ssub.s32 %s11, 2
        // Predicated region
        $region37: #{tpu_custom_call.1} parent=35 // pred_check
          %p1052 = pneg %p92
        $region38: #{tpu_custom_call.1} parent=35 // pred_check_branch
          %1054 = sbr.rel (%p1052) target = $region40
        $region39: #{tpu_custom_call.1} parent=35 // pred_region
          %s1055 = sand.u32 %s77, 1
          %s1056 = scalar_lea.sflag [#allocation3], %s1055
          %s1057 = sand.u32 %s77, 1
          %s1058 = scalar_lea.vmem [#allocation2], %s1057
          %1059 = dma.done %s1056, 16
        $region40: #{tpu_custom_call.1} parent=35 // pred_fallthru
          _
      $region36: #{tpu_custom_call.1} parent=5 // pred_fallthru
        _
    $region6: #{tpu_custom_call.1} parent=1 // loop_footer
      %s15 = sadd.s32 1, %s11
    $region7: #{tpu_custom_call.1} parent=1 // loop_footer_branch
      %10 = sbr.rel target = $region3
    $region8: #{tpu_custom_call.1} parent=1 // loop_exit
      _
    %1060 = vsyncpa [#allocation3], 1
    %s1061 = scalar_lea.sflag [#allocation3], 1
    %1062 = vsyncpa %s1061, 1

</llo_original>
